<compile_context>
chip_gen: v6e
topology: v6e:2x2x1
jax: 0.10.0
libtpu: 0.0.40
codegen_flags: <defaults>
</compile_context>

<pallas_src>
import functools

import jax
import jax.numpy as jnp
from jax.experimental import pallas as pl
from jax.experimental.pallas import tpu as pltpu


def _round_up(x, m):
    return (x + m - 1) // m * m


def _pick_tile_v(voc_size, emb_size, topic_size, n, rho_itemsize,
                 vmem_budget_bytes=16 * 1024 * 1024):
    """Largest V-tile (multiple of 8) whose double-buffered streamed blocks fit the budget.

    Streamed per grid step (worst case over the two passes, both double-buffered):
      pass 1: rho tile (TV, E) in  + logits tile (TV, T) out
      pass 2: logits tile (TV, T) in + out tile (TV, N) out
    The budget stays well below v7x's 64 MiB VMEM (and the default scoped limit) so
    the resident alphas / x / lse blocks and compiler scratch always fit alongside.
    """
    per_row = 2 * (max(emb_size * rho_itemsize, n * 4) + topic_size * 4)
    tile = vmem_budget_bytes // max(per_row, 1)
    tile = max(8, (tile // 8) * 8)
    tile = min(tile, _round_up(voc_size, 8))
    return int(tile)


def _logits_lse_kernel(rho_ref, alphas_ref, logits_ref, lse_ref, m_acc, z_acc,
                       *, voc_size, tile_v):
    """Pass 1: logits = rho_tile @ alphas.T, plus online logsumexp over the V axis."""
    i = pl.program_id(0)

    @pl.when(i == 0)
    def _init():
        m_acc[...] = jnp.full_like(m_acc, -jnp.inf)
        z_acc[...] = jnp.zeros_like(z_acc)

    # rho @ alphas.T via a transposed contraction -- no in-kernel .T / XLU transpose.
    logits = jax.lax.dot_general(
        rho_ref[...], alphas_ref[...],
        dimension_numbers=(((1,), (1,)), ((), ())),
        preferred_element_type=jnp.float32)
    logits_ref[...] = logits

    # Mask rows past voc_size (the last V tile may be partial).
    row = i * tile_v + jax.lax.broadcasted_iota(jnp.int32, (tile_v, 1), 0)
    masked = jnp.where(row < voc_size, logits, -jnp.inf)

    # Streaming (online) max / sum-exp over V, per topic column.
    m_prev = m_acc[...]
    m_new = jnp.maximum(m_prev, jnp.max(masked, axis=0, keepdims=True))
    z_acc[...] = z_acc[...] * jnp.exp(m_prev - m_new) + jnp.sum(
        jnp.exp(masked - m_new), axis=0, keepdims=True)
    m_acc[...] = m_new

    @pl.when(i == pl.num_programs(0) - 1)
    def _finalize():
        lse_ref[...] = m_acc[...] + jnp.log(z_acc[...])


def _probs_matmul_kernel(logits_ref, lse_ref, x_ref, o_ref):
    """Pass 2: out_tile = softmax(logits)_tile @ x, with softmax = exp(logits - lse)."""
    # Clamp at 0 keeps padded (out-of-range) rows of the last tile finite; it is a
    # no-op for valid rows since logits - logsumexp <= 0.
    w = jnp.exp(jnp.minimum(logits_ref[...] - lse_ref[...], 0.0))
    o_ref[...] = jnp.dot(
        w, x_ref[...], preferred_element_type=jnp.float32
    ).astype(o_ref.dtype)


@functools.partial(jax.jit, static_argnames=("t", "tile_v", "matmul_dtype"))
def conv1d_softmax_etm_legacy(rho, alphas, x, t=0, *, tile_v=None, matmul_dtype=None):
    """Pallas implementation of Conv1DSoftmaxEtm_legacy.forward.

    rho:    (voc_size, emb_size)
    alphas: (topic_size, emb_size)
    x:      any shape whose trailing dim is N and which flattens to (topic_size, N)
    returns (voc_size, N) float32

    matmul_dtype: optionally cast rho/alphas (e.g. jnp.bfloat16) to halve the dominant
    HBM stream on v6e/v7x; softmax math and accumulation stay f32.
    """
    del t  # only affects autograd in the PyTorch module, not forward values

    n = x.shape[-1]
    x2d = x.reshape(-1, n).astype(jnp.float32)  # mirrors x.view(-1, x.size(-1))
    voc_size, emb_size = rho.shape
    topic_size = alphas.shape[0]
    assert x2d.shape[0] == topic_size, "x must flatten to (topic_size, N)"

    if matmul_dtype is not None:
        rho = rho.astype(matmul_dtype)
        alphas = alphas.astype(matmul_dtype)

    itemsize = jnp.dtype(rho.dtype).itemsize
    if tile_v is None:
        tile_v = _pick_tile_v(voc_size, emb_size, topic_size, n, itemsize)
    tile_v = int(tile_v)
    num_tiles = pl.cdiv(voc_size, tile_v)

    # ---- Pass 1: stream rho once; produce (V, T) logits cache + (1, T) logsumexp.
    logits, lse = pl.pallas_call(
        functools.partial(_logits_lse_kernel, voc_size=voc_size, tile_v=tile_v),
        grid=(num_tiles,),
        in_specs=(
            pl.BlockSpec((tile_v, emb_size), lambda i: (i, 0)),
            pl.BlockSpec((topic_size, emb_size), lambda i: (0, 0)),
        ),
        out_specs=(
            pl.BlockSpec((tile_v, topic_size), lambda i: (i, 0)),
            pl.BlockSpec((1, topic_size), lambda i: (0, 0)),
        ),
        out_shape=(
            jax.ShapeDtypeStruct((voc_size, topic_size), jnp.float32),
            jax.ShapeDtypeStruct((1, topic_size), jnp.float32),
        ),
        scratch_shapes=[
            pltpu.VMEM((1, topic_size), jnp.float32),  # running max
            pltpu.VMEM((1, topic_size), jnp.float32),  # running sum-exp
        ],
        compiler_params=pltpu.CompilerParams(dimension_semantics=("arbitrary",)),
        cost_estimate=pl.CostEstimate(
            flops=2 * voc_size * topic_size * emb_size,
            transcendentals=voc_size * topic_size + topic_size,
            bytes_accessed=(itemsize * voc_size * emb_size
                            + itemsize * topic_size * emb_size
                            + 4 * voc_size * topic_size
                            + 4 * topic_size),
        ),
    )(rho, alphas)

    # ---- Pass 2: out = exp(logits - lse) @ x, tiled over V (embarrassingly parallel).
    out = pl.pallas_call(
        _probs_matmul_kernel,
        grid=(num_tiles,),
        in_specs=(
            pl.BlockSpec((tile_v, topic_size), lambda i: (i, 0)),
            pl.BlockSpec((1, topic_size), lambda i: (0, 0)),
            pl.BlockSpec((topic_size, n), lambda i: (0, 0)),
        ),
        out_specs=pl.BlockSpec((tile_v, n), lambda i: (i, 0)),
        out_shape=jax.ShapeDtypeStruct((voc_size, n), jnp.float32),
        compiler_params=pltpu.CompilerParams(dimension_semantics=("parallel",)),
        cost_estimate=pl.CostEstimate(
            flops=2 * voc_size * topic_size * n,
            transcendentals=voc_size * topic_size,
            bytes_accessed=4 * (voc_size * topic_size + topic_size
                                + topic_size * n + voc_size * n),
        ),
    )(logits, lse, x2d)
    return out


def _reference(rho, alphas, x):
    w = rho @ alphas.T
    w = jax.nn.softmax(w, axis=0)
    return w @ x.reshape(-1, x.shape[-1])


if __name__ == "__main__":
    # voc_size deliberately not a multiple of the tile so the partial-tile masking
    # and multi-tile streaming paths are exercised.
    voc_size, topic_size, emb_size, n = 1000, 16, 32, 128

    key = jax.random.PRNGKey(0)
    k_rho, k_alpha, k_x = jax.random.split(key, 3)

    # nn.init.normal_(w, std=0.02) equivalents
    rho = 0.02 * jax.random.normal(k_rho, (voc_size, emb_size), dtype=jnp.float32)
    alphas = 0.02 * jax.random.normal(k_alpha, (topic_size, emb_size), dtype=jnp.float32)
    # x flattens to (topic_size, N)
    x = jax.random.normal(k_x, (topic_size, 1, n), dtype=jnp.float32)

    out = conv1d_softmax_etm_legacy(rho, alphas, x, t=0, tile_v=256)
    out = jax.block_until_ready(out)

    ref = _reference(rho, alphas, x)
    assert out.shape == (voc_size, n)
    assert jnp.allclose(out, ref, atol=1e-5, rtol=1e-4), "mismatch vs reference"

    print("KERNEL_OK")
</pallas_src>

<mosaic_0001>
module attributes {stable_mosaic.version = 11 : i64} {
  func.func @_probs_matmul_kernel(%arg0: i32, %arg1: memref<256x16xf32, #tpu.memory_space<vmem>>, %arg2: memref<1x16xf32, #tpu.memory_space<vmem>>, %arg3: memref<16x128xf32, #tpu.memory_space<vmem>>, %arg4: memref<256x128xf32, #tpu.memory_space<vmem>>) attributes {dimension_semantics = [#tpu.dimension_semantics<parallel>], iteration_bounds = array<i64: 4>, scalar_prefetch = 0 : i64, scratch_operands = 0 : i64, tpu.core_type = #tpu.core_type<tc>, window_params = [{transform_indices = @transform_0, window_bounds = array<i64: 256, 16>}, {pipeline_mode = #tpu.pipeline_mode<synchronous>, transform_indices = @transform_1, window_bounds = array<i64: 1, 16>}, {pipeline_mode = #tpu.pipeline_mode<synchronous>, transform_indices = @transform_2, window_bounds = array<i64: 16, 128>}, {transform_indices = @transform_3, window_bounds = array<i64: 256, 128>}]} {
    %c0 = arith.constant 0 : index
    %c0_0 = arith.constant 0 : index
    %0 = vector.load %arg1[%c0, %c0_0] : memref<256x16xf32, #tpu.memory_space<vmem>>, vector<256x16xf32>
    %c0_1 = arith.constant 0 : index
    %c0_2 = arith.constant 0 : index
    %1 = vector.load %arg2[%c0_1, %c0_2] : memref<1x16xf32, #tpu.memory_space<vmem>>, vector<1x16xf32>
    %2 = vector.broadcast %1 : vector<1x16xf32> to vector<256x16xf32>
    %3 = arith.subf %0, %2 : vector<256x16xf32>
    %cst = arith.constant 0.000000e+00 : f32
    %4 = vector.broadcast %cst : f32 to vector<256x16xf32>
    %5 = arith.minimumf %3, %4 : vector<256x16xf32>
    %6 = math.exp %5 : vector<256x16xf32>
    %c0_3 = arith.constant 0 : index
    %c0_4 = arith.constant 0 : index
    %7 = vector.load %arg3[%c0_3, %c0_4] : memref<16x128xf32, #tpu.memory_space<vmem>>, vector<16x128xf32>
    %cst_5 = arith.constant dense<0.000000e+00> : vector<256x128xf32>
    %8 = tpu.matmul %6, %7, %cst_5 {dimension_numbers = #tpu.dot_dimension_numbers<[1], [0], [0], [1], [0, 0, 1, 1], [], []>} : vector<256x16xf32>, vector<16x128xf32>, vector<256x128xf32> -> vector<256x128xf32>
    %c0_6 = arith.constant 0 : index
    %c0_7 = arith.constant 0 : index
    %9 = vector.load %arg4[%c0_6, %c0_7] : memref<256x128xf32, #tpu.memory_space<vmem>>, vector<256x128xf32>
    tpu.vector_store %arg4[%c0_6, %c0_7], %8 {strides = array<i32>} : memref<256x128xf32, #tpu.memory_space<vmem>>, vector<256x128xf32>,
    return
  }
  func.func @transform_0(%arg0: i32) -> (i32, i32) {
    %c0_i32 = arith.constant 0 : i32
    %c0_i32_0 = arith.constant 0 : i32
    return %arg0, %c0_i32 : i32, i32
  }
  func.func @transform_1(%arg0: i32) -> (i32, i32) {
    %c0_i32 = arith.constant 0 : i32
    %c0_i32_0 = arith.constant 0 : i32
    %c0_i32_1 = arith.constant 0 : i32
    return %c0_i32, %c0_i32_0 : i32, i32
  }
  func.func @transform_2(%arg0: i32) -> (i32, i32) {
    %c0_i32 = arith.constant 0 : i32
    %c0_i32_0 = arith.constant 0 : i32
    %c0_i32_1 = arith.constant 0 : i32
    return %c0_i32, %c0_i32_0 : i32, i32
  }
  func.func @transform_3(%arg0: i32) -> (i32, i32) {
    %c0_i32 = arith.constant 0 : i32
    %c0_i32_0 = arith.constant 0 : i32
    return %arg0, %c0_i32 : i32, i32
  }
}

module attributes {stable_mosaic.version = 11 : i64} {
  func.func @_logits_lse_kernel(%arg0: i32, %arg1: memref<256x32xf32, #tpu.memory_space<vmem>>, %arg2: memref<16x32xf32, #tpu.memory_space<vmem>>, %arg3: memref<256x16xf32, #tpu.memory_space<vmem>>, %arg4: memref<1x16xf32, #tpu.memory_space<vmem>>, %arg5: memref<1x16xf32, #tpu.memory_space<vmem>>, %arg6: memref<1x16xf32, #tpu.memory_space<vmem>>) attributes {dimension_semantics = [#tpu.dimension_semantics<arbitrary>], iteration_bounds = array<i64: 4>, scalar_prefetch = 0 : i64, scratch_operands = 2 : i64, tpu.core_type = #tpu.core_type<tc>, window_params = [{transform_indices = @transform_0, window_bounds = array<i64: 256, 32>}, {pipeline_mode = #tpu.pipeline_mode<synchronous>, transform_indices = @transform_1, window_bounds = array<i64: 16, 32>}, {transform_indices = @transform_2, window_bounds = array<i64: 256, 16>}, {pipeline_mode = #tpu.pipeline_mode<synchronous>, transform_indices = @transform_3, window_bounds = array<i64: 1, 16>}]} {
    %c0_i32 = arith.constant 0 : i32
    %0 = arith.cmpi eq, %arg0, %c0_i32 : i32
    %1 = arith.extui %0 : i1 to i32
    %c0_i32_0 = arith.constant 0 : i32
    %2 = arith.cmpi ne, %1, %c0_i32_0 : i32
    scf.if %2 {
      %cst_18 = arith.constant 0xFF800000 : f32
      %36 = vector.broadcast %cst_18 : f32 to vector<1x16xf32>
      %c0_19 = arith.constant 0 : index
      %c0_20 = arith.constant 0 : index
      %37 = vector.load %arg5[%c0_19, %c0_20] : memref<1x16xf32, #tpu.memory_space<vmem>>, vector<1x16xf32>
      tpu.vector_store %arg5[%c0_19, %c0_20], %36 {strides = array<i32>} : memref<1x16xf32, #tpu.memory_space<vmem>>, vector<1x16xf32>,
      %cst_21 = arith.constant 0.000000e+00 : f32
      %38 = vector.broadcast %cst_21 : f32 to vector<1x16xf32>
      %c0_22 = arith.constant 0 : index
      %c0_23 = arith.constant 0 : index
      %39 = vector.load %arg6[%c0_22, %c0_23] : memref<1x16xf32, #tpu.memory_space<vmem>>, vector<1x16xf32>
      tpu.vector_store %arg6[%c0_22, %c0_23], %38 {strides = array<i32>} : memref<1x16xf32, #tpu.memory_space<vmem>>, vector<1x16xf32>,
    } else {
    }
    %c0 = arith.constant 0 : index
    %c0_1 = arith.constant 0 : index
    %3 = vector.load %arg1[%c0, %c0_1] : memref<256x32xf32, #tpu.memory_space<vmem>>, vector<256x32xf32>
    %c0_2 = arith.constant 0 : index
    %c0_3 = arith.constant 0 : index
    %4 = vector.load %arg2[%c0_2, %c0_3] : memref<16x32xf32, #tpu.memory_space<vmem>>, vector<16x32xf32>
    %cst = arith.constant dense<0.000000e+00> : vector<256x16xf32>
    %5 = tpu.matmul %3, %4, %cst {dimension_numbers = #tpu.dot_dimension_numbers<[1], [1], [0], [0], [0, 0, 1, 0], [], []>} : vector<256x32xf32>, vector<16x32xf32>, vector<256x16xf32> -> vector<256x16xf32>
    %c0_4 = arith.constant 0 : index
    %c0_5 = arith.constant 0 : index
    %6 = vector.load %arg3[%c0_4, %c0_5] : memref<256x16xf32, #tpu.memory_space<vmem>>, vector<256x16xf32>
    tpu.vector_store %arg3[%c0_4, %c0_5], %5 {strides = array<i32>} : memref<256x16xf32, #tpu.memory_space<vmem>>, vector<256x16xf32>,
    %c256_i32 = arith.constant 256 : i32
    %7 = arith.muli %arg0, %c256_i32 : i32
    %8 = tpu.iota {dimensions = array<i32: 0>} : vector<256x1xi32>
    %9 = vector.broadcast %7 : i32 to vector<256x1xi32>
    %10 = arith.addi %9, %8 : vector<256x1xi32>
    %c1000_i32 = arith.constant 1000 : i32
    %11 = vector.broadcast %c1000_i32 : i32 to vector<256x1xi32>
    %12 = arith.cmpi slt, %10, %11 : vector<256x1xi32>
    %cst_6 = arith.constant 0xFF800000 : f32
    %13 = vector.shape_cast %12 : vector<256x1xi1> to vector<256x1xi1>
    %14 = vector.broadcast %13 : vector<256x1xi1> to vector<256x16xi1>
    %15 = vector.broadcast %cst_6 : f32 to vector<256x16xf32>
    %16 = arith.select %14, %5, %15 : vector<256x16xi1>, vector<256x16xf32>
    %c0_7 = arith.constant 0 : index
    %c0_8 = arith.constant 0 : index
    %17 = vector.load %arg5[%c0_7, %c0_8] : memref<1x16xf32, #tpu.memory_space<vmem>>, vector<1x16xf32>
    %cst_9 = arith.constant dense<0xFF800000> : vector<16xf32>
    %18 = vector.multi_reduction <maximumf>, %16, %cst_9 [0] : vector<256x16xf32> to vector<16xf32>
    %19 = vector.shape_cast %18 : vector<16xf32> to vector<1x16xf32>
    %20 = arith.maximumf %17, %19 : vector<1x16xf32>
    %c0_10 = arith.constant 0 : index
    %c0_11 = arith.constant 0 : index
    %21 = vector.load %arg6[%c0_10, %c0_11] : memref<1x16xf32, #tpu.memory_space<vmem>>, vector<1x16xf32>
    %22 = arith.subf %17, %20 : vector<1x16xf32>
    %23 = math.exp %22 : vector<1x16xf32>
    %24 = arith.mulf %21, %23 : vector<1x16xf32>
    %25 = vector.broadcast %20 : vector<1x16xf32> to vector<256x16xf32>
    %26 = arith.subf %16, %25 : vector<256x16xf32>
    %27 = math.exp %26 : vector<256x16xf32>
    %cst_12 = arith.constant dense<0.000000e+00> : vector<16xf32>
    %28 = vector.multi_reduction <add>, %27, %cst_12 [0] : vector<256x16xf32> to vector<16xf32>
    %29 = vector.shape_cast %28 : vector<16xf32> to vector<1x16xf32>
    %30 = arith.addf %24, %29 : vector<1x16xf32>
    %c0_13 = arith.constant 0 : index
    %c0_14 = arith.constant 0 : index
    %31 = vector.load %arg6[%c0_13, %c0_14] : memref<1x16xf32, #tpu.memory_space<vmem>>, vector<1x16xf32>
    tpu.vector_store %arg6[%c0_13, %c0_14], %30 {strides = array<i32>} : memref<1x16xf32, #tpu.memory_space<vmem>>, vector<1x16xf32>,
    %c0_15 = arith.constant 0 : index
    %c0_16 = arith.constant 0 : index
    %32 = vector.load %arg5[%c0_15, %c0_16] : memref<1x16xf32, #tpu.memory_space<vmem>>, vector<1x16xf32>
    tpu.vector_store %arg5[%c0_15, %c0_16], %20 {strides = array<i32>} : memref<1x16xf32, #tpu.memory_space<vmem>>, vector<1x16xf32>,
    %c3_i32 = arith.constant 3 : i32
    %33 = arith.cmpi eq, %arg0, %c3_i32 : i32
    %34 = arith.extui %33 : i1 to i32
    %c0_i32_17 = arith.constant 0 : i32
    %35 = arith.cmpi ne, %34, %c0_i32_17 : i32
    scf.if %35 {
      %c0_18 = arith.constant 0 : index
      %c0_19 = arith.constant 0 : index
      %36 = vector.load %arg5[%c0_18, %c0_19] : memref<1x16xf32, #tpu.memory_space<vmem>>, vector<1x16xf32>
      %c0_20 = arith.constant 0 : index
      %c0_21 = arith.constant 0 : index
      %37 = vector.load %arg6[%c0_20, %c0_21] : memref<1x16xf32, #tpu.memory_space<vmem>>, vector<1x16xf32>
      %38 = math.log %37 : vector<1x16xf32>
      %39 = arith.addf %36, %38 : vector<1x16xf32>
      %c0_22 = arith.constant 0 : index
      %c0_23 = arith.constant 0 : index
      %40 = vector.load %arg4[%c0_22, %c0_23] : memref<1x16xf32, #tpu.memory_space<vmem>>, vector<1x16xf32>
      tpu.vector_store %arg4[%c0_22, %c0_23], %39 {strides = array<i32>} : memref<1x16xf32, #tpu.memory_space<vmem>>, vector<1x16xf32>,
    } else {
    }
    return
  }
  func.func @transform_0(%arg0: i32) -> (i32, i32) {
    %c0_i32 = arith.constant 0 : i32
    %c0_i32_0 = arith.constant 0 : i32
    return %arg0, %c0_i32 : i32, i32
  }
  func.func @transform_1(%arg0: i32) -> (i32, i32) {
    %c0_i32 = arith.constant 0 : i32
    %c0_i32_0 = arith.constant 0 : i32
    %c0_i32_1 = arith.constant 0 : i32
    return %c0_i32, %c0_i32_0 : i32, i32
  }
  func.func @transform_2(%arg0: i32) -> (i32, i32) {
    %c0_i32 = arith.constant 0 : i32
    %c0_i32_0 = arith.constant 0 : i32
    return %arg0, %c0_i32 : i32, i32
  }
  func.func @transform_3(%arg0: i32) -> (i32, i32) {
    %c0_i32 = arith.constant 0 : i32
    %c0_i32_0 = arith.constant 0 : i32
    %c0_i32_1 = arith.constant 0 : i32
    return %c0_i32, %c0_i32_0 : i32, i32
  }
}

</mosaic_0001>

<llo_original>
// kernel: conv1d_softmax_etm_legacy.3
$region0: #{conv1d_softmax_etm_legacy.3}
  #allocation0 [shape = 'u32[]', space=smem, size = 0x4, offset = 0x4, fixed_abs, tag = 'smem constant byte address 0x4 - core index']
  #allocation1 [shape = 'u32[144,128]{1,0:T(1,128)}', space=vmem, size = 0x12000, scoped, tag = 'internal scratch']
  %s0 = inlined_call_operand.vmem [shape: f32[1000,16], index: 0, kind: input, shape index: {}]
  %s1 = inlined_call_operand.vmem [shape: f32[1,16], index: 1, kind: input, shape index: {}]
  %s2 = inlined_call_operand.vmem [shape: f32[16,128], index: 2, kind: input, shape index: {}]
  %s3 = inlined_call_operand.hbm [shape: f32[1000,128], index: 3, kind: output, shape index: {}]
  %s4 = sld [smem:[#allocation0]]
  $region45: #{conv1d_softmax_etm_legacy.3} parent=0
    _
  %s6 = ssub.s32 1, %s4
  %s7 = scalar_select 0, %s6, %s4
  $region1: #{conv1d_softmax_etm_legacy.3} parent=0
    #allocation2 [shape = 'u8[262144]{0}', space=vmem, size = 0x40000, scoped, tag = 'output window, operand 0']
    #allocation3 [shape = 's32[2]{0}', space=sflag, size = 0x8, scoped, tag = 'scoped memory for conv1d_softmax_etm_legacy.3']
    %8 = vsyncpa [#allocation3], 0
    %s9 = scalar_lea.sflag [#allocation3], 1
    %10 = vsyncpa %s9, 0
    loop: start=0, step=1, limit=6
    $region2: #{conv1d_softmax_etm_legacy.3} parent=1 // loop_pre_header
      _
    $region3: #{conv1d_softmax_etm_legacy.3} parent=1 // loop_header
      %s12 = sphi 0, %s16
      %p13 = scmp.ge.s32.totalorder %s12, 6
      %s22 = sphi 0, %s24
      %s25 = sphi 0, %s22
      %s26 = sphi 0, %s25
      %s42 = sphi 0, %s26
      %s46 = sphi 0, %s46
      %s48 = sphi 0, %s46
      %s49 = sphi 0, %s48
      %s63 = sphi 0, %s49
      %s67 = sphi 0, %s67
      %s69 = sphi 0, %s67
      %s70 = sphi 0, %s69
      %s84 = sphi 0, %s70
      %s90 = sphi 0, %s92
      %s93 = sphi 0, %s90
      %s94 = sphi 0, %s93
      %s110 = sphi 0, %s94
    $region4: #{conv1d_softmax_etm_legacy.3} parent=1 // loop_header_branch
      %15 = sbr.rel (%p13) target = $region8
    $region5: #{conv1d_softmax_etm_legacy.3} parent=1 // loop_body
      %s17 = ssub.s32 %s12, 1
      %s18 = ssub.s32 %s12, 2
      %s19 = sadd.s32 %s12, 1
      %s20 = ssub.s32 %s12, %s19
      %p21 = scmp.eq.s32.totalorder %s20, 0
      %s23 = sadd.s32 %s22, 1
      %s24 = scalar_select %p21, %s22, %s23
      %p27 = pneg %p21
      %p28 = scmp.eq.s32.totalorder %s12, 3
      %p29 = por %p27, %p28
      %p30 = scmp.ne.s32.totalorder %s22, %s25
      %p31 = scmp.eq.s32.totalorder %s12, 0
      %p32 = por %p30, %p31
      %p33 = scmp.ne.s32.totalorder %s22, %s25
      %p34 = scmp.eq.s32.totalorder %s17, 3
      %p35 = por %p33, %p34
      %p36 = scmp.ne.s32.totalorder %s25, %s26
      %p37 = scmp.eq.s32.totalorder %s17, 0
      %p38 = por %p36, %p37
      %p39 = scmp.ne.s32.totalorder %s25, %s26
      %p40 = scmp.eq.s32.totalorder %s18, 3
      %p41 = por %p39, %p40
      %p43 = scmp.ne.s32.totalorder %s26, %s42
      %p44 = scmp.eq.s32.totalorder %s18, 0
      %p45 = por %p43, %p44
      %s47 = sadd.s32 %s46, 1
      %p50 = scmp.eq.s32.totalorder %s12, 3
      %p51 = scmp.ne.s32.totalorder %s46, %s48
      %p52 = scmp.eq.s32.totalorder %s12, 0
      %p53 = por %p51, %p52
      %p54 = scmp.ne.s32.totalorder %s46, %s48
      %p55 = scmp.eq.s32.totalorder %s17, 3
      %p56 = por %p54, %p55
      %p57 = scmp.ne.s32.totalorder %s48, %s49
      %p58 = scmp.eq.s32.totalorder %s17, 0
      %p59 = por %p57, %p58
      %p60 = scmp.ne.s32.totalorder %s48, %s49
      %p61 = scmp.eq.s32.totalorder %s18, 3
      %p62 = por %p60, %p61
      %p64 = scmp.ne.s32.totalorder %s49, %s63
      %p65 = scmp.eq.s32.totalorder %s18, 0
      %p66 = por %p64, %p65
      %s68 = sadd.s32 %s67, 1
      %p71 = scmp.eq.s32.totalorder %s12, 3
      %p72 = scmp.ne.s32.totalorder %s67, %s69
      %p73 = scmp.eq.s32.totalorder %s12, 0
      %p74 = por %p72, %p73
      %p75 = scmp.ne.s32.totalorder %s67, %s69
      %p76 = scmp.eq.s32.totalorder %s17, 3
      %p77 = por %p75, %p76
      %p78 = scmp.ne.s32.totalorder %s69, %s70
      %p79 = scmp.eq.s32.totalorder %s17, 0
      %p80 = por %p78, %p79
      %p81 = scmp.ne.s32.totalorder %s69, %s70
      %p82 = scmp.eq.s32.totalorder %s18, 3
      %p83 = por %p81, %p82
      %p85 = scmp.ne.s32.totalorder %s70, %s84
      %p86 = scmp.eq.s32.totalorder %s18, 0
      %p87 = por %p85, %p86
      %s88 = ssub.s32 %s12, %s19
      %p89 = scmp.eq.s32.totalorder %s88, 0
      %s91 = sadd.s32 %s90, 1
      %s92 = scalar_select %p89, %s90, %s91
      %p95 = pneg %p89
      %p96 = scmp.eq.s32.totalorder %s12, 3
      %p97 = por %p95, %p96
      %p98 = scmp.ne.s32.totalorder %s90, %s93
      %p99 = scmp.eq.s32.totalorder %s12, 0
      %p100 = por %p98, %p99
      %p101 = scmp.ne.s32.totalorder %s90, %s93
      %p102 = scmp.eq.s32.totalorder %s17, 3
      %p103 = por %p101, %p102
      %p104 = scmp.ne.s32.totalorder %s93, %s94
      %p105 = scmp.eq.s32.totalorder %s17, 0
      %p106 = por %p104, %p105
      %p107 = scmp.ne.s32.totalorder %s93, %s94
      %p108 = scmp.eq.s32.totalorder %s18, 3
      %p109 = por %p107, %p108
      %p111 = scmp.ne.s32.totalorder %s94, %s110
      %p112 = scmp.eq.s32.totalorder %s18, 0
      %p113 = por %p111, %p112
      %p114 = scmp.le.s32.totalorder 1, %s12
      %p115 = scmp.lt.s32.totalorder %s12, 5
      %p116 = pnand %p114, %p115
      %p117 = pneg %p116
      // Predicated region
      $region9: #{conv1d_softmax_etm_legacy.3} parent=5 // pred_check
        _
      $region10: #{conv1d_softmax_etm_legacy.3} parent=5 // pred_check_branch
        %119 = sbr.rel (%p116) target = $region12
      $region11: #{conv1d_softmax_etm_legacy.3} parent=5 // pred_region
        %s120 = ssub.s32 %s12, 1
        // Predicated region
        $region13: #{conv1d_softmax_etm_legacy.3} parent=11 // pred_check
          %p121 = pneg %p59
        $region14: #{conv1d_softmax_etm_legacy.3} parent=11 // pred_check_branch
          %123 = sbr.rel (%p121) target = $region16
        $region15: #{conv1d_softmax_etm_legacy.3} parent=11 // pred_region
          _
        $region16: #{conv1d_softmax_etm_legacy.3} parent=11 // pred_fallthru
          _
        // Predicated region
        $region17: #{conv1d_softmax_etm_legacy.3} parent=11 // pred_check
          %p124 = pneg %p80
        $region18: #{conv1d_softmax_etm_legacy.3} parent=11 // pred_check_branch
          %126 = sbr.rel (%p124) target = $region20
        $region19: #{conv1d_softmax_etm_legacy.3} parent=11 // pred_region
          _
        $region20: #{conv1d_softmax_etm_legacy.3} parent=11 // pred_fallthru
          _
      $region12: #{conv1d_softmax_etm_legacy.3} parent=5 // pred_fallthru
        _
      %p127 = scmp.lt.s32.totalorder %s12, 4
      // Predicated region
      $region21: #{conv1d_softmax_etm_legacy.3} parent=5 // pred_check
        %p128 = pneg %p127
      $region22: #{conv1d_softmax_etm_legacy.3} parent=5 // pred_check_branch
        %130 = sbr.rel (%p128) target = $region24
      $region23: #{conv1d_softmax_etm_legacy.3} parent=5 // pred_region
        // Predicated region
        $region25: #{conv1d_softmax_etm_legacy.3} parent=23 // pred_check
          %p131 = pneg %p32
        $region26: #{conv1d_softmax_etm_legacy.3} parent=23 // pred_check_branch
          %133 = sbr.rel (%p131) target = $region28
        $region27: #{conv1d_softmax_etm_legacy.3} parent=23 // pred_region
          %s134 = smul.u32 32, %s12
          %s135 = ssub.s32 125, %s134
          %p136 = scmp.lt.s32.totalorder %s135, 32
          %s137 = scalar_select %p136, %s135, 32
          %s138 = smul.u32 128, %s137
          %p139 = scmp.lt.s32.totalorder %s134, 124
          %s140 = scalar_select %p139, %s134, 124
          %s141 = smul.addr %s140, 8
          %s142 = scalar_lea.vmem %s0, %s141
          %s143 = smul.u32 32, %s12
          %s144 = ssub.s32 125, %s143
          %p145 = scmp.lt.s32.totalorder %s144, 32
          %s146 = scalar_select %p145, %s144, 32
          %s147 = smul.u32 128, %s146
        $region28: #{conv1d_softmax_etm_legacy.3} parent=23 // pred_fallthru
          _
      $region24: #{conv1d_softmax_etm_legacy.3} parent=5 // pred_fallthru
        _
      %p148 = scmp.le.s32.totalorder 1, %s12
      %p149 = scmp.lt.s32.totalorder %s12, 5
      %p150 = pnand %p148, %p149
      %p151 = pneg %p150
      // Predicated region
      $region29: #{conv1d_softmax_etm_legacy.3} parent=5 // pred_check
        _
      $region30: #{conv1d_softmax_etm_legacy.3} parent=5 // pred_check_branch
        %153 = sbr.rel (%p150) target = $region32
      $region31: #{conv1d_softmax_etm_legacy.3} parent=5 // pred_region
        %s154 = ssub.s32 %s12, 1
        %s155 = smul.u32 32, %s17
        %s156 = ssub.s32 125, %s155
        %p157 = scmp.lt.s32.totalorder %s156, 32
        %s158 = scalar_select %p157, %s156, 32
        %s159 = smul.u32 128, %s158
        %p160 = scmp.lt.s32.totalorder %s155, 124
        %s161 = scalar_select %p160, %s155, 124
        %s162 = smul.addr %s161, 8
        %s163 = scalar_lea.vmem %s0, %s162
        %p164 = pneg %p38
        %p165 = pneg %p35
        %p166 = pneg %p59
        %p167 = pneg %p56
        %p168 = pneg %p80
        %p169 = pneg %p77
        %p170 = pneg %p106
        %p171 = pneg %p103
        %s172 = sand.u32 %s93, 1
        %s173 = scalar_lea.sflag [#allocation3], %s172
        %s174 = sand.u32 %s93, 1
        %s175 = smul.addr %s174, 256
        %s176 = scalar_lea.vmem [#allocation2], %s175
        %s177 = smul.u32 32, %s17
        %s178 = ssub.s32 125, %s177
        %p179 = scmp.lt.s32.totalorder %s178, 32
        %s180 = scalar_select %p179, %s178, 32
        %s181 = smul.u32 128, %s180
        %p182 = scmp.lt.s32.totalorder %s177, 124
        %s183 = scalar_select %p182, %s177, 124
        %s184 = smul.addr %s183, 8
        %s185 = scalar_lea.vmem %s0, %s184
        %s186 = smul.u32 32, %s17
        %s187 = ssub.s32 125, %s186
        %p188 = scmp.lt.s32.totalorder %s187, 32
        %s189 = scalar_select %p188, %s187, 32
        %s190 = smul.u32 128, %s189
        %s191 = smul.u32 32, %s17
        %s192 = ssub.s32 125, %s191
        %p193 = scmp.lt.s32.totalorder %s192, 32
        %s194 = scalar_select %p193, %s192, 32
        %s195 = smul.u32 128, %s194
        %v196 = vld [vmem:[%s185] sm:$0xff]
        %v197 = vld [vmem:[%s185 + $0x8] sm:$0xff]
        %v198 = vld [vmem:[%s185 + $0x10] sm:$0xff]
        %v199 = vld [vmem:[%s185 + $0x18] sm:$0xff]
        %v200 = vld [vmem:[%s185 + $0x20] sm:$0xff]
        %v201 = vld [vmem:[%s185 + $0x28] sm:$0xff]
        %v202 = vld [vmem:[%s185 + $0x30] sm:$0xff]
        %v203 = vld [vmem:[%s185 + $0x38] sm:$0xff]
        %v204 = vld [vmem:[%s185 + $0x40] sm:$0xff]
        %v205 = vld [vmem:[%s185 + $0x48] sm:$0xff]
        %v206 = vld [vmem:[%s185 + $0x50] sm:$0xff]
        %v207 = vld [vmem:[%s185 + $0x58] sm:$0xff]
        %v208 = vld [vmem:[%s185 + $0x60] sm:$0xff]
        %v209 = vld [vmem:[%s185 + $0x68] sm:$0xff]
        %v210 = vld [vmem:[%s185 + $0x70] sm:$0xff]
        %v211 = vld [vmem:[%s185 + $0x78] sm:$0xff]
        %v212 = vld [vmem:[%s185 + $0x80] sm:$0xff]
        %v213 = vld [vmem:[%s185 + $0x88] sm:$0xff]
        %v214 = vld [vmem:[%s185 + $0x90] sm:$0xff]
        %v215 = vld [vmem:[%s185 + $0x98] sm:$0xff]
        %v216 = vld [vmem:[%s185 + $0xa0] sm:$0xff]
        %v217 = vld [vmem:[%s185 + $0xa8] sm:$0xff]
        %v218 = vld [vmem:[%s185 + $0xb0] sm:$0xff]
        %v219 = vld [vmem:[%s185 + $0xb8] sm:$0xff]
        %v220 = vld [vmem:[%s185 + $0xc0] sm:$0xff]
        %v221 = vld [vmem:[%s185 + $0xc8] sm:$0xff]
        %v222 = vld [vmem:[%s185 + $0xd0] sm:$0xff]
        %v223 = vld [vmem:[%s185 + $0xd8] sm:$0xff]
        %v224 = vld [vmem:[%s185 + $0xe0] sm:$0xff]
        %v225 = vld [vmem:[%s185 + $0xe8] sm:$0xff]
        %v226 = vld [vmem:[%s185 + $0xf0] sm:$0xff]
        %v227 = vld [vmem:[%s185 + $0xf8] sm:$0xff]
        %v228 = vld [vmem:[%s1] sm:$0x1]
        %v230 = vlaneseq
        %v231 = vshrl.u32 %v230, 7
        %v232 = vsub.s32 0, %v231
        %v233 = vrot.slane %v228, %v232
        %v235 = vsub.f32 %v196, %v233
        %v236 = vsub.f32 %v197, %v233
        %v237 = vsub.f32 %v198, %v233
        %v238 = vsub.f32 %v199, %v233
        %v239 = vsub.f32 %v200, %v233
        %v240 = vsub.f32 %v201, %v233
        %v241 = vsub.f32 %v202, %v233
        %v242 = vsub.f32 %v203, %v233
        %v243 = vsub.f32 %v204, %v233
        %v244 = vsub.f32 %v205, %v233
        %v245 = vsub.f32 %v206, %v233
        %v246 = vsub.f32 %v207, %v233
        %v247 = vsub.f32 %v208, %v233
        %v248 = vsub.f32 %v209, %v233
        %v249 = vsub.f32 %v210, %v233
        %v250 = vsub.f32 %v211, %v233
        %v251 = vsub.f32 %v212, %v233
        %v252 = vsub.f32 %v213, %v233
        %v253 = vsub.f32 %v214, %v233
        %v254 = vsub.f32 %v215, %v233
        %v255 = vsub.f32 %v216, %v233
        %v256 = vsub.f32 %v217, %v233
        %v257 = vsub.f32 %v218, %v233
        %v258 = vsub.f32 %v219, %v233
        %v259 = vsub.f32 %v220, %v233
        %v260 = vsub.f32 %v221, %v233
        %v261 = vsub.f32 %v222, %v233
        %v262 = vsub.f32 %v223, %v233
        %v263 = vsub.f32 %v224, %v233
        %v264 = vsub.f32 %v225, %v233
        %v265 = vsub.f32 %v226, %v233
        %v266 = vsub.f32 %v227, %v233
        %v267 = vmin.f32 %v235, 0.0
        %v268 = vmin.f32 %v236, 0.0
        %v269 = vmin.f32 %v237, 0.0
        %v270 = vmin.f32 %v238, 0.0
        %v271 = vmin.f32 %v239, 0.0
        %v272 = vmin.f32 %v240, 0.0
        %v273 = vmin.f32 %v241, 0.0
        %v274 = vmin.f32 %v242, 0.0
        %v275 = vmin.f32 %v243, 0.0
        %v276 = vmin.f32 %v244, 0.0
        %v277 = vmin.f32 %v245, 0.0
        %v278 = vmin.f32 %v246, 0.0
        %v279 = vmin.f32 %v247, 0.0
        %v280 = vmin.f32 %v248, 0.0
        %v281 = vmin.f32 %v249, 0.0
        %v282 = vmin.f32 %v250, 0.0
        %v283 = vmin.f32 %v251, 0.0
        %v284 = vmin.f32 %v252, 0.0
        %v285 = vmin.f32 %v253, 0.0
        %v286 = vmin.f32 %v254, 0.0
        %v287 = vmin.f32 %v255, 0.0
        %v288 = vmin.f32 %v256, 0.0
        %v289 = vmin.f32 %v257, 0.0
        %v290 = vmin.f32 %v258, 0.0
        %v291 = vmin.f32 %v259, 0.0
        %v292 = vmin.f32 %v260, 0.0
        %v293 = vmin.f32 %v261, 0.0
        %v294 = vmin.f32 %v262, 0.0
        %v295 = vmin.f32 %v263, 0.0
        %v296 = vmin.f32 %v264, 0.0
        %v297 = vmin.f32 %v265, 0.0
        %v298 = vmin.f32 %v266, 0.0
        %v299 = vmul.f32 %v267, 1.442695
        %v300 = vpow.pop %v299
        %v301 = vmul.f32 %v268, 1.442695
        %v302 = vpow.pop %v301
        %v303 = vmul.f32 %v269, 1.442695
        %v304 = vpow.pop %v303
        %v305 = vmul.f32 %v270, 1.442695
        %v306 = vpow.pop %v305
        %v307 = vmul.f32 %v271, 1.442695
        %v308 = vpow.pop %v307
        %v309 = vmul.f32 %v272, 1.442695
        %v310 = vpow.pop %v309
        %v311 = vmul.f32 %v273, 1.442695
        %v312 = vpow.pop %v311
        %v313 = vmul.f32 %v274, 1.442695
        %v314 = vpow.pop %v313
        %v315 = vmul.f32 %v275, 1.442695
        %v316 = vpow.pop %v315
        %v317 = vmul.f32 %v276, 1.442695
        %v318 = vpow.pop %v317
        %v319 = vmul.f32 %v277, 1.442695
        %v320 = vpow.pop %v319
        %v321 = vmul.f32 %v278, 1.442695
        %v322 = vpow.pop %v321
        %v323 = vmul.f32 %v279, 1.442695
        %v324 = vpow.pop %v323
        %v325 = vmul.f32 %v280, 1.442695
        %v326 = vpow.pop %v325
        %v327 = vmul.f32 %v281, 1.442695
        %v328 = vpow.pop %v327
        %v329 = vmul.f32 %v282, 1.442695
        %v330 = vpow.pop %v329
        %v331 = vmul.f32 %v283, 1.442695
        %v332 = vpow.pop %v331
        %v333 = vmul.f32 %v284, 1.442695
        %v334 = vpow.pop %v333
        %v335 = vmul.f32 %v285, 1.442695
        %v336 = vpow.pop %v335
        %v337 = vmul.f32 %v286, 1.442695
        %v338 = vpow.pop %v337
        %v339 = vmul.f32 %v287, 1.442695
        %v340 = vpow.pop %v339
        %v341 = vmul.f32 %v288, 1.442695
        %v342 = vpow.pop %v341
        %v343 = vmul.f32 %v289, 1.442695
        %v344 = vpow.pop %v343
        %v345 = vmul.f32 %v290, 1.442695
        %v346 = vpow.pop %v345
        %v347 = vmul.f32 %v291, 1.442695
        %v348 = vpow.pop %v347
        %v349 = vmul.f32 %v292, 1.442695
        %v350 = vpow.pop %v349
        %v351 = vmul.f32 %v293, 1.442695
        %v352 = vpow.pop %v351
        %v353 = vmul.f32 %v294, 1.442695
        %v354 = vpow.pop %v353
        %v355 = vmul.f32 %v295, 1.442695
        %v356 = vpow.pop %v355
        %v357 = vmul.f32 %v296, 1.442695
        %v358 = vpow.pop %v357
        %v359 = vmul.f32 %v297, 1.442695
        %v360 = vpow.pop %v359
        %v361 = vmul.f32 %v298, 1.442695
        %v362 = vpow.pop %v361
        %v363 = vld [vmem:[%s2] sm:$0xff]
        %v364 = vld [vmem:[%s2 + $0x8] sm:$0xff]
        %vm365 = vcmask 130048
        %v367 = vsel %vm365, %v300, 0
        %v370 = vsel %vm365, %v302, 0
        %v373 = vsel %vm365, %v304, 0
        %v376 = vsel %vm365, %v306, 0
        %v379 = vsel %vm365, %v308, 0
        %v382 = vsel %vm365, %v310, 0
        %v385 = vsel %vm365, %v312, 0
        %v388 = vsel %vm365, %v314, 0
        %v391 = vsel %vm365, %v316, 0
        %v394 = vsel %vm365, %v318, 0
        %v397 = vsel %vm365, %v320, 0
        %v400 = vsel %vm365, %v322, 0
        %v403 = vsel %vm365, %v324, 0
        %v406 = vsel %vm365, %v326, 0
        %v409 = vsel %vm365, %v328, 0
        %v412 = vsel %vm365, %v330, 0
        %v415 = vsel %vm365, %v332, 0
        %v418 = vsel %vm365, %v334, 0
        %v421 = vsel %vm365, %v336, 0
        %v424 = vsel %vm365, %v338, 0
        %v427 = vsel %vm365, %v340, 0
        %v430 = vsel %vm365, %v342, 0
        %v433 = vsel %vm365, %v344, 0
        %v436 = vsel %vm365, %v346, 0
        %v439 = vsel %vm365, %v348, 0
        %v442 = vsel %vm365, %v350, 0
        %v445 = vsel %vm365, %v352, 0
        %v448 = vsel %vm365, %v354, 0
        %v451 = vsel %vm365, %v356, 0
        %v454 = vsel %vm365, %v358, 0
        %v457 = vsel %vm365, %v360, 0
        %v460 = vsel %vm365, %v362, 0
        %462 = vmatprep.subr.mxu0 0.0
        %463 = vmatpush1.msra.mxu0 0.0
        %464 = vmatprep.subr.mxu0 0.0
        %465 = vmatpush1.msra.mxu0 0.0
        %466 = vmatprep.subr.mxu0 0.0
        %467 = vmatpush1.msra.mxu0 0.0
        %468 = vmatprep.subr.mxu0 0.0
        %469 = vmatpush1.msra.mxu0 0.0
        %470 = vmatprep.subr.mxu0 0.0
        %471 = vmatpush1.msra.mxu0 0.0
        %472 = vmatprep.subr.mxu0 0.0
        %473 = vmatpush1.msra.mxu0 0.0
        %474 = vmatprep.subr.mxu0 0.0
        %475 = vmatpush1.msra.mxu0 0.0
        %476 = vmatprep.subr.mxu0 0.0
        %477 = vmatpush1.msra.mxu0 0.0
        %478 = vmatprep.subr.mxu0 0.0
        %479 = vmatpush1.msra.mxu0 0.0
        %480 = vmatprep.subr.mxu0 0.0
        %481 = vmatpush1.msra.mxu0 0.0
        %482 = vmatprep.subr.mxu0 0.0
        %483 = vmatpush1.msra.mxu0 0.0
        %484 = vmatprep.subr.mxu0 0.0
        %485 = vmatpush1.msra.mxu0 0.0
        %486 = vmatprep.subr.mxu0 0.0
        %487 = vmatpush1.msra.mxu0 0.0
        %488 = vmatprep.subr.mxu0 0.0
        %489 = vmatpush1.msra.mxu0 0.0
        %490 = vmatprep.subr.mxu0 0.0
        %491 = vmatpush1.msra.mxu0 %v364
        %492 = vmatprep.subr.mxu0 0.0
        %493 = vmatpush1.msra.mxu0 %v363
        %494 = vmatprep.subr.mxu0 0.0
        %495 = vmatpush2.msra.mxu0 0.0
        %496 = vmatprep.subr.mxu0 0.0
        %497 = vmatpush2.msra.mxu0 0.0
        %498 = vmatprep.subr.mxu0 0.0
        %499 = vmatpush2.msra.mxu0 0.0
        %500 = vmatprep.subr.mxu0 0.0
        %501 = vmatpush2.msra.mxu0 0.0
        %502 = vmatprep.subr.mxu0 0.0
        %503 = vmatpush2.msra.mxu0 0.0
        %504 = vmatprep.subr.mxu0 0.0
        %505 = vmatpush2.msra.mxu0 0.0
        %506 = vmatprep.subr.mxu0 0.0
        %507 = vmatpush2.msra.mxu0 0.0
        %508 = vmatprep.subr.mxu0 0.0
        %509 = vmatpush2.msra.mxu0 0.0
        %510 = vmatprep.subr.mxu0 0.0
        %511 = vmatpush2.msra.mxu0 0.0
        %512 = vmatprep.subr.mxu0 0.0
        %513 = vmatpush2.msra.mxu0 0.0
        %514 = vmatprep.subr.mxu0 0.0
        %515 = vmatpush2.msra.mxu0 0.0
        %516 = vmatprep.subr.mxu0 0.0
        %517 = vmatpush2.msra.mxu0 0.0
        %518 = vmatprep.subr.mxu0 0.0
        %519 = vmatpush2.msra.mxu0 0.0
        %520 = vmatprep.subr.mxu0 0.0
        %521 = vmatpush2.msra.mxu0 0.0
        %522 = vmatprep.subr.mxu0 0.0
        %523 = vmatpush2.msra.mxu0 0.0
        %524 = vmatprep.subr.mxu0 0.0
        %525 = vmatpush2.msra.mxu0 0.0
        %526 = vmatprep.mubr.f32.mxu0 0.0
        %527 = vmatmul.mubr.f32.gmra.mxu0 %v367
        %v528 = vpop.f32.mrf.mxu0
        %v529 = vadd.f32 0.0, %v528
        %v530 = vpop.f32.mrf.mxu0
        %531 = vmatprep.mubr.f32.mxu0 0.0
        %532 = vmatmul.mubr.f32.gmra.mxu0 %v370
        %v533 = vpop.f32.mrf.mxu0
        %v534 = vadd.f32 0.0, %v533
        %v535 = vpop.f32.mrf.mxu0
        %536 = vmatprep.mubr.f32.mxu0 0.0
        %537 = vmatmul.mubr.f32.gmra.mxu0 %v373
        %v538 = vpop.f32.mrf.mxu0
        %v539 = vadd.f32 0.0, %v538
        %v540 = vpop.f32.mrf.mxu0
        %541 = vmatprep.mubr.f32.mxu0 0.0
        %542 = vmatmul.mubr.f32.gmra.mxu0 %v376
        %v543 = vpop.f32.mrf.mxu0
        %v544 = vadd.f32 0.0, %v543
        %v545 = vpop.f32.mrf.mxu0
        %546 = vmatprep.mubr.f32.mxu0 0.0
        %547 = vmatmul.mubr.f32.gmra.mxu0 %v379
        %v548 = vpop.f32.mrf.mxu0
        %v549 = vadd.f32 0.0, %v548
        %v550 = vpop.f32.mrf.mxu0
        %551 = vmatprep.mubr.f32.mxu0 0.0
        %552 = vmatmul.mubr.f32.gmra.mxu0 %v382
        %v553 = vpop.f32.mrf.mxu0
        %v554 = vadd.f32 0.0, %v553
        %v555 = vpop.f32.mrf.mxu0
        %556 = vmatprep.mubr.f32.mxu0 0.0
        %557 = vmatmul.mubr.f32.gmra.mxu0 %v385
        %v558 = vpop.f32.mrf.mxu0
        %v559 = vadd.f32 0.0, %v558
        %v560 = vpop.f32.mrf.mxu0
        %561 = vmatprep.mubr.f32.mxu0 0.0
        %562 = vmatmul.mubr.f32.gmra.mxu0 %v388
        %v563 = vpop.f32.mrf.mxu0
        %v564 = vadd.f32 0.0, %v563
        %v565 = vpop.f32.mrf.mxu0
        %566 = vmatprep.mubr.f32.mxu0 0.0
        %567 = vmatmul.mubr.f32.gmra.mxu0 %v391
        %v568 = vpop.f32.mrf.mxu0
        %v569 = vadd.f32 0.0, %v568
        %v570 = vpop.f32.mrf.mxu0
        %571 = vmatprep.mubr.f32.mxu0 0.0
        %572 = vmatmul.mubr.f32.gmra.mxu0 %v394
        %v573 = vpop.f32.mrf.mxu0
        %v574 = vadd.f32 0.0, %v573
        %v575 = vpop.f32.mrf.mxu0
        %576 = vmatprep.mubr.f32.mxu0 0.0
        %577 = vmatmul.mubr.f32.gmra.mxu0 %v397
        %v578 = vpop.f32.mrf.mxu0
        %v579 = vadd.f32 0.0, %v578
        %v580 = vpop.f32.mrf.mxu0
        %581 = vmatprep.mubr.f32.mxu0 0.0
        %582 = vmatmul.mubr.f32.gmra.mxu0 %v400
        %v583 = vpop.f32.mrf.mxu0
        %v584 = vadd.f32 0.0, %v583
        %v585 = vpop.f32.mrf.mxu0
        %586 = vmatprep.mubr.f32.mxu0 0.0
        %587 = vmatmul.mubr.f32.gmra.mxu0 %v403
        %v588 = vpop.f32.mrf.mxu0
        %v589 = vadd.f32 0.0, %v588
        %v590 = vpop.f32.mrf.mxu0
        %591 = vmatprep.mubr.f32.mxu0 0.0
        %592 = vmatmul.mubr.f32.gmra.mxu0 %v406
        %v593 = vpop.f32.mrf.mxu0
        %v594 = vadd.f32 0.0, %v593
        %v595 = vpop.f32.mrf.mxu0
        %596 = vmatprep.mubr.f32.mxu0 0.0
        %597 = vmatmul.mubr.f32.gmra.mxu0 %v409
        %v598 = vpop.f32.mrf.mxu0
        %v599 = vadd.f32 0.0, %v598
        %v600 = vpop.f32.mrf.mxu0
        %601 = vmatprep.mubr.f32.mxu0 0.0
        %602 = vmatmul.mubr.f32.gmra.mxu0 %v412
        %v603 = vpop.f32.mrf.mxu0
        %v604 = vadd.f32 0.0, %v603
        %v605 = vpop.f32.mrf.mxu0
        %606 = vmatprep.mubr.f32.mxu0 0.0
        %607 = vmatmul.mubr.f32.gmra.mxu0 %v415
        %v608 = vpop.f32.mrf.mxu0
        %v609 = vadd.f32 0.0, %v608
        %v610 = vpop.f32.mrf.mxu0
        %611 = vmatprep.mubr.f32.mxu0 0.0
        %612 = vmatmul.mubr.f32.gmra.mxu0 %v418
        %v613 = vpop.f32.mrf.mxu0
        %v614 = vadd.f32 0.0, %v613
        %v615 = vpop.f32.mrf.mxu0
        %616 = vmatprep.mubr.f32.mxu0 0.0
        %617 = vmatmul.mubr.f32.gmra.mxu0 %v421
        %v618 = vpop.f32.mrf.mxu0
        %v619 = vadd.f32 0.0, %v618
        %v620 = vpop.f32.mrf.mxu0
        %621 = vmatprep.mubr.f32.mxu0 0.0
        %622 = vmatmul.mubr.f32.gmra.mxu0 %v424
        %v623 = vpop.f32.mrf.mxu0
        %v624 = vadd.f32 0.0, %v623
        %v625 = vpop.f32.mrf.mxu0
        %626 = vmatprep.mubr.f32.mxu0 0.0
        %627 = vmatmul.mubr.f32.gmra.mxu0 %v427
        %v628 = vpop.f32.mrf.mxu0
        %v629 = vadd.f32 0.0, %v628
        %v630 = vpop.f32.mrf.mxu0
        %631 = vmatprep.mubr.f32.mxu0 0.0
        %632 = vmatmul.mubr.f32.gmra.mxu0 %v430
        %v633 = vpop.f32.mrf.mxu0
        %v634 = vadd.f32 0.0, %v633
        %v635 = vpop.f32.mrf.mxu0
        %636 = vmatprep.mubr.f32.mxu0 0.0
        %637 = vmatmul.mubr.f32.gmra.mxu0 %v433
        %v638 = vpop.f32.mrf.mxu0
        %v639 = vadd.f32 0.0, %v638
        %v640 = vpop.f32.mrf.mxu0
        %641 = vmatprep.mubr.f32.mxu0 0.0
        %642 = vmatmul.mubr.f32.gmra.mxu0 %v436
        %v643 = vpop.f32.mrf.mxu0
        %v644 = vadd.f32 0.0, %v643
        %v645 = vpop.f32.mrf.mxu0
        %646 = vmatprep.mubr.f32.mxu0 0.0
        %647 = vmatmul.mubr.f32.gmra.mxu0 %v439
        %v648 = vpop.f32.mrf.mxu0
        %v649 = vadd.f32 0.0, %v648
        %v650 = vpop.f32.mrf.mxu0
        %651 = vmatprep.mubr.f32.mxu0 0.0
        %652 = vmatmul.mubr.f32.gmra.mxu0 %v442
        %v653 = vpop.f32.mrf.mxu0
        %v654 = vadd.f32 0.0, %v653
        %v655 = vpop.f32.mrf.mxu0
        %656 = vmatprep.mubr.f32.mxu0 0.0
        %657 = vmatmul.mubr.f32.gmra.mxu0 %v445
        %v658 = vpop.f32.mrf.mxu0
        %v659 = vadd.f32 0.0, %v658
        %v660 = vpop.f32.mrf.mxu0
        %661 = vmatprep.mubr.f32.mxu0 0.0
        %662 = vmatmul.mubr.f32.gmra.mxu0 %v448
        %v663 = vpop.f32.mrf.mxu0
        %v664 = vadd.f32 0.0, %v663
        %v665 = vpop.f32.mrf.mxu0
        %666 = vmatprep.mubr.f32.mxu0 0.0
        %667 = vmatmul.mubr.f32.gmra.mxu0 %v451
        %v668 = vpop.f32.mrf.mxu0
        %v669 = vadd.f32 0.0, %v668
        %v670 = vpop.f32.mrf.mxu0
        %671 = vmatprep.mubr.f32.mxu0 0.0
        %672 = vmatmul.mubr.f32.gmra.mxu0 %v454
        %v673 = vpop.f32.mrf.mxu0
        %v674 = vadd.f32 0.0, %v673
        %v675 = vpop.f32.mrf.mxu0
        %676 = vmatprep.mubr.f32.mxu0 0.0
        %677 = vmatmul.mubr.f32.gmra.mxu0 %v457
        %v678 = vpop.f32.mrf.mxu0
        %v679 = vadd.f32 0.0, %v678
        %v680 = vpop.f32.mrf.mxu0
        %681 = vmatprep.mubr.f32.mxu0 0.0
        %682 = vmatmul.mubr.f32.gmra.mxu0 %v460
        %v683 = vpop.f32.mrf.mxu0
        %v684 = vadd.f32 0.0, %v683
        %v685 = vpop.f32.mrf.mxu0
        %686 = vdwg.mxu0
        %687 = vst [vmem:[%s176] sm:$0xff] %v529
        %688 = vst [vmem:[%s176 + $0x8] sm:$0xff] %v534
        %689 = vst [vmem:[%s176 + $0x10] sm:$0xff] %v539
        %690 = vst [vmem:[%s176 + $0x18] sm:$0xff] %v544
        %691 = vst [vmem:[%s176 + $0x20] sm:$0xff] %v549
        %692 = vst [vmem:[%s176 + $0x28] sm:$0xff] %v554
        %693 = vst [vmem:[%s176 + $0x30] sm:$0xff] %v559
        %694 = vst [vmem:[%s176 + $0x38] sm:$0xff] %v564
        %695 = vst [vmem:[%s176 + $0x40] sm:$0xff] %v569
        %696 = vst [vmem:[%s176 + $0x48] sm:$0xff] %v574
        %697 = vst [vmem:[%s176 + $0x50] sm:$0xff] %v579
        %698 = vst [vmem:[%s176 + $0x58] sm:$0xff] %v584
        %699 = vst [vmem:[%s176 + $0x60] sm:$0xff] %v589
        %700 = vst [vmem:[%s176 + $0x68] sm:$0xff] %v594
        %701 = vst [vmem:[%s176 + $0x70] sm:$0xff] %v599
        %702 = vst [vmem:[%s176 + $0x78] sm:$0xff] %v604
        %703 = vst [vmem:[%s176 + $0x80] sm:$0xff] %v609
        %704 = vst [vmem:[%s176 + $0x88] sm:$0xff] %v614
        %705 = vst [vmem:[%s176 + $0x90] sm:$0xff] %v619
        %706 = vst [vmem:[%s176 + $0x98] sm:$0xff] %v624
        %707 = vst [vmem:[%s176 + $0xa0] sm:$0xff] %v629
        %708 = vst [vmem:[%s176 + $0xa8] sm:$0xff] %v634
        %709 = vst [vmem:[%s176 + $0xb0] sm:$0xff] %v639
        %710 = vst [vmem:[%s176 + $0xb8] sm:$0xff] %v644
        %711 = vst [vmem:[%s176 + $0xc0] sm:$0xff] %v649
        %712 = vst [vmem:[%s176 + $0xc8] sm:$0xff] %v654
        %713 = vst [vmem:[%s176 + $0xd0] sm:$0xff] %v659
        %714 = vst [vmem:[%s176 + $0xd8] sm:$0xff] %v664
        %715 = vst [vmem:[%s176 + $0xe0] sm:$0xff] %v669
        %716 = vst [vmem:[%s176 + $0xe8] sm:$0xff] %v674
        %717 = vst [vmem:[%s176 + $0xf0] sm:$0xff] %v679
        %718 = vst [vmem:[%s176 + $0xf8] sm:$0xff] %v684
        %s719 = sand.u32 %s93, 1
        %s720 = scalar_lea.sflag [#allocation3], %s719
        %s721 = sand.u32 %s93, 1
        %s722 = smul.addr %s721, 256
        %s723 = scalar_lea.vmem [#allocation2], %s722
        // Predicated region
        $region33: #{conv1d_softmax_etm_legacy.3} parent=31 // pred_check
          %p724 = pneg %p103
        $region34: #{conv1d_softmax_etm_legacy.3} parent=31 // pred_check_branch
          %726 = sbr.rel (%p724) target = $region36
        $region35: #{conv1d_softmax_etm_legacy.3} parent=31 // pred_region
          %s727 = smul.u32 32, %s17
          %s728 = ssub.s32 125, %s727
          %p729 = scmp.lt.s32.totalorder %s728, 32
          %s730 = scalar_select %p729, %s728, 32
          %s731 = smul.u32 128, %s730
          %s733 = ssub.s32 4096, %s731
          %734 = vsyncadd %s720, %s733
          %p735 = scmp.ne.s32.totalorder 0, %s731
          %s736 = smul.addr %s727, 128
          %s737 = scalar_lea.hbm %s3, %s736
          %s738 = smul.u32 8, %s730
          %s739 = sshll.u32 %s723, 4
          %s740 = int_to_ptr.vmem [resolvable:$true] %s739
          %s741 = sshll.u32 %s738, 4
          %745 = dma.vmem_to_hbm [thread:$0]  (%p735), %s740, %s741, %s737, %s720, 128, 128, 8
        $region36: #{conv1d_softmax_etm_legacy.3} parent=31 // pred_fallthru
          _
      $region32: #{conv1d_softmax_etm_legacy.3} parent=5 // pred_fallthru
        _
      %p746 = scmp.le.s32.totalorder 2, %s12
      // Predicated region
      $region37: #{conv1d_softmax_etm_legacy.3} parent=5 // pred_check
        %p747 = pneg %p746
      $region38: #{conv1d_softmax_etm_legacy.3} parent=5 // pred_check_branch
        %749 = sbr.rel (%p747) target = $region40
      $region39: #{conv1d_softmax_etm_legacy.3} parent=5 // pred_region
        %s750 = ssub.s32 %s12, 2
        // Predicated region
        $region41: #{conv1d_softmax_etm_legacy.3} parent=39 // pred_check
          %p751 = pneg %p109
        $region42: #{conv1d_softmax_etm_legacy.3} parent=39 // pred_check_branch
          %753 = sbr.rel (%p751) target = $region44
        $region43: #{conv1d_softmax_etm_legacy.3} parent=39 // pred_region
          %s754 = sand.u32 %s94, 1
          %s755 = scalar_lea.sflag [#allocation3], %s754
          %s756 = sand.u32 %s94, 1
          %s757 = smul.addr %s756, 256
          %s758 = scalar_lea.vmem [#allocation2], %s757
          %759 = dma.done %s755, 4096
        $region44: #{conv1d_softmax_etm_legacy.3} parent=39 // pred_fallthru
          _
      $region40: #{conv1d_softmax_etm_legacy.3} parent=5 // pred_fallthru
        _
    $region6: #{conv1d_softmax_etm_legacy.3} parent=1 // loop_footer
      %s16 = sadd.s32 1, %s12
    $region7: #{conv1d_softmax_etm_legacy.3} parent=1 // loop_footer_branch
      %11 = sbr.rel target = $region3
    $region8: #{conv1d_softmax_etm_legacy.3} parent=1 // loop_exit
      _
    %760 = vsyncpa [#allocation3], 1
    %s761 = scalar_lea.sflag [#allocation3], 1
    %762 = vsyncpa %s761, 1

// kernel: conv1d_softmax_etm_legacy.2
$region0: #{conv1d_softmax_etm_legacy.2}
  #allocation0 [shape = 'u32[]', space=smem, size = 0x4, offset = 0x4, fixed_abs, tag = 'smem constant byte address 0x4 - core index']
  #allocation1 [shape = 'u32[144,128]{1,0:T(1,128)}', space=vmem, size = 0x12000, scoped, tag = 'internal scratch']
  #allocation2 [shape = 'f32[1,16]{1,0:T(1,128)}', space=vmem, size = 0x200, scoped, tag = 'scratch operand']
  #allocation3 [shape = 'f32[1,16]{1,0:T(1,128)}', space=vmem, size = 0x200, scoped, tag = 'scratch operand']
  %s0 = inlined_call_operand.vmem [shape: f32[1000,32], index: 0, kind: input, shape index: {}]
  %s1 = inlined_call_operand.vmem [shape: f32[16,32], index: 1, kind: input, shape index: {}]
  %s2 = inlined_call_operand.vmem [shape: f32[1000,16], index: 2, kind: output, shape index: {0}]
  %s3 = inlined_call_operand.vmem [shape: f32[1,16], index: 3, kind: output, shape index: {1}]
  %4 = xla_tuple %s2, %s3
  %s5 = sld [smem:[#allocation0]]
  $region105: #{conv1d_softmax_etm_legacy.2} parent=0
    _
  %s7 = ssub.s32 1, %s5
  %s8 = scalar_select 0, %s7, %s5
  $region1: #{conv1d_softmax_etm_legacy.2} parent=0
    #allocation4 [shape = 'u8[262144]{0}', space=vmem, size = 0x40000, scoped, tag = 'output window, operand 0']
    loop: start=0, step=1, limit=6
    $region2: #{conv1d_softmax_etm_legacy.2} parent=1 // loop_pre_header
      _
    $region3: #{conv1d_softmax_etm_legacy.2} parent=1 // loop_header
      %s10 = sphi 0, %s14
      %p11 = scmp.ge.s32.totalorder %s10, 6
      %s20 = sphi 0, %s22
      %s23 = sphi 0, %s20
      %s24 = sphi 0, %s23
      %s40 = sphi 0, %s24
      %s44 = sphi 0, %s44
      %s46 = sphi 0, %s44
      %s47 = sphi 0, %s46
      %s61 = sphi 0, %s47
      %s67 = sphi 0, %s69
      %s70 = sphi 0, %s67
      %s71 = sphi 0, %s70
      %s87 = sphi 0, %s71
      %s91 = sphi 0, %s91
      %s93 = sphi 0, %s91
      %s94 = sphi 0, %s93
      %s108 = sphi 0, %s94
    $region4: #{conv1d_softmax_etm_legacy.2} parent=1 // loop_header_branch
      %13 = sbr.rel (%p11) target = $region8
    $region5: #{conv1d_softmax_etm_legacy.2} parent=1 // loop_body
      %s15 = ssub.s32 %s10, 1
      %s16 = ssub.s32 %s10, 2
      %s17 = sadd.s32 %s10, 1
      %s18 = ssub.s32 %s10, %s17
      %p19 = scmp.eq.s32.totalorder %s18, 0
      %s21 = sadd.s32 %s20, 1
      %s22 = scalar_select %p19, %s20, %s21
      %p25 = pneg %p19
      %p26 = scmp.eq.s32.totalorder %s10, 3
      %p27 = por %p25, %p26
      %p28 = scmp.ne.s32.totalorder %s20, %s23
      %p29 = scmp.eq.s32.totalorder %s10, 0
      %p30 = por %p28, %p29
      %p31 = scmp.ne.s32.totalorder %s20, %s23
      %p32 = scmp.eq.s32.totalorder %s15, 3
      %p33 = por %p31, %p32
      %p34 = scmp.ne.s32.totalorder %s23, %s24
      %p35 = scmp.eq.s32.totalorder %s15, 0
      %p36 = por %p34, %p35
      %p37 = scmp.ne.s32.totalorder %s23, %s24
      %p38 = scmp.eq.s32.totalorder %s16, 3
      %p39 = por %p37, %p38
      %p41 = scmp.ne.s32.totalorder %s24, %s40
      %p42 = scmp.eq.s32.totalorder %s16, 0
      %p43 = por %p41, %p42
      %s45 = sadd.s32 %s44, 1
      %p48 = scmp.eq.s32.totalorder %s10, 3
      %p49 = scmp.ne.s32.totalorder %s44, %s46
      %p50 = scmp.eq.s32.totalorder %s10, 0
      %p51 = por %p49, %p50
      %p52 = scmp.ne.s32.totalorder %s44, %s46
      %p53 = scmp.eq.s32.totalorder %s15, 3
      %p54 = por %p52, %p53
      %p55 = scmp.ne.s32.totalorder %s46, %s47
      %p56 = scmp.eq.s32.totalorder %s15, 0
      %p57 = por %p55, %p56
      %p58 = scmp.ne.s32.totalorder %s46, %s47
      %p59 = scmp.eq.s32.totalorder %s16, 3
      %p60 = por %p58, %p59
      %p62 = scmp.ne.s32.totalorder %s47, %s61
      %p63 = scmp.eq.s32.totalorder %s16, 0
      %p64 = por %p62, %p63
      %s65 = ssub.s32 %s10, %s17
      %p66 = scmp.eq.s32.totalorder %s65, 0
      %s68 = sadd.s32 %s67, 1
      %s69 = scalar_select %p66, %s67, %s68
      %p72 = pneg %p66
      %p73 = scmp.eq.s32.totalorder %s10, 3
      %p74 = por %p72, %p73
      %p75 = scmp.ne.s32.totalorder %s67, %s70
      %p76 = scmp.eq.s32.totalorder %s10, 0
      %p77 = por %p75, %p76
      %p78 = scmp.ne.s32.totalorder %s67, %s70
      %p79 = scmp.eq.s32.totalorder %s15, 3
      %p80 = por %p78, %p79
      %p81 = scmp.ne.s32.totalorder %s70, %s71
      %p82 = scmp.eq.s32.totalorder %s15, 0
      %p83 = por %p81, %p82
      %p84 = scmp.ne.s32.totalorder %s70, %s71
      %p85 = scmp.eq.s32.totalorder %s16, 3
      %p86 = por %p84, %p85
      %p88 = scmp.ne.s32.totalorder %s71, %s87
      %p89 = scmp.eq.s32.totalorder %s16, 0
      %p90 = por %p88, %p89
      %s92 = sadd.s32 %s91, 1
      %p95 = scmp.eq.s32.totalorder %s10, 3
      %p96 = scmp.ne.s32.totalorder %s91, %s93
      %p97 = scmp.eq.s32.totalorder %s10, 0
      %p98 = por %p96, %p97
      %p99 = scmp.ne.s32.totalorder %s91, %s93
      %p100 = scmp.eq.s32.totalorder %s15, 3
      %p101 = por %p99, %p100
      %p102 = scmp.ne.s32.totalorder %s93, %s94
      %p103 = scmp.eq.s32.totalorder %s15, 0
      %p104 = por %p102, %p103
      %p105 = scmp.ne.s32.totalorder %s93, %s94
      %p106 = scmp.eq.s32.totalorder %s16, 3
      %p107 = por %p105, %p106
      %p109 = scmp.ne.s32.totalorder %s94, %s108
      %p110 = scmp.eq.s32.totalorder %s16, 0
      %p111 = por %p109, %p110
      %p112 = scmp.le.s32.totalorder 1, %s10
      %p113 = scmp.lt.s32.totalorder %s10, 5
      %p114 = pnand %p112, %p113
      %p115 = pneg %p114
      // Predicated region
      $region9: #{conv1d_softmax_etm_legacy.2} parent=5 // pred_check
        _
      $region10: #{conv1d_softmax_etm_legacy.2} parent=5 // pred_check_branch
        %117 = sbr.rel (%p114) target = $region12
      $region11: #{conv1d_softmax_etm_legacy.2} parent=5 // pred_region
        %s118 = ssub.s32 %s10, 1
        // Predicated region
        $region13: #{conv1d_softmax_etm_legacy.2} parent=11 // pred_check
          %p119 = pneg %p57
        $region14: #{conv1d_softmax_etm_legacy.2} parent=11 // pred_check_branch
          %121 = sbr.rel (%p119) target = $region16
        $region15: #{conv1d_softmax_etm_legacy.2} parent=11 // pred_region
          _
        $region16: #{conv1d_softmax_etm_legacy.2} parent=11 // pred_fallthru
          _
      $region12: #{conv1d_softmax_etm_legacy.2} parent=5 // pred_fallthru
        _
      %p122 = scmp.lt.s32.totalorder %s10, 4
      // Predicated region
      $region17: #{conv1d_softmax_etm_legacy.2} parent=5 // pred_check
        %p123 = pneg %p122
      $region18: #{conv1d_softmax_etm_legacy.2} parent=5 // pred_check_branch
        %125 = sbr.rel (%p123) target = $region20
      $region19: #{conv1d_softmax_etm_legacy.2} parent=5 // pred_region
        // Predicated region
        $region21: #{conv1d_softmax_etm_legacy.2} parent=19 // pred_check
          %p126 = pneg %p30
        $region22: #{conv1d_softmax_etm_legacy.2} parent=19 // pred_check_branch
          %128 = sbr.rel (%p126) target = $region24
        $region23: #{conv1d_softmax_etm_legacy.2} parent=19 // pred_region
          %s129 = smul.u32 32, %s10
          %s130 = ssub.s32 125, %s129
          %p131 = scmp.lt.s32.totalorder %s130, 32
          %s132 = scalar_select %p131, %s130, 32
          %s133 = smul.u32 128, %s132
          %p134 = scmp.lt.s32.totalorder %s129, 124
          %s135 = scalar_select %p134, %s129, 124
          %s136 = smul.addr %s135, 8
          %s137 = scalar_lea.vmem %s0, %s136
          %s138 = smul.u32 32, %s10
          %s139 = ssub.s32 125, %s138
          %p140 = scmp.lt.s32.totalorder %s139, 32
          %s141 = scalar_select %p140, %s139, 32
          %s142 = smul.u32 128, %s141
        $region24: #{conv1d_softmax_etm_legacy.2} parent=19 // pred_fallthru
          _
      $region20: #{conv1d_softmax_etm_legacy.2} parent=5 // pred_fallthru
        _
      %p143 = scmp.le.s32.totalorder 1, %s10
      %p144 = scmp.lt.s32.totalorder %s10, 5
      %p145 = pnand %p143, %p144
      %p146 = pneg %p145
      // Predicated region
      $region25: #{conv1d_softmax_etm_legacy.2} parent=5 // pred_check
        _
      $region26: #{conv1d_softmax_etm_legacy.2} parent=5 // pred_check_branch
        %148 = sbr.rel (%p145) target = $region28
      $region27: #{conv1d_softmax_etm_legacy.2} parent=5 // pred_region
        %s149 = ssub.s32 %s10, 1
        %s150 = smul.u32 32, %s15
        %s151 = ssub.s32 125, %s150
        %p152 = scmp.lt.s32.totalorder %s151, 32
        %s153 = scalar_select %p152, %s151, 32
        %s154 = smul.u32 128, %s153
        %p155 = scmp.lt.s32.totalorder %s150, 124
        %s156 = scalar_select %p155, %s150, 124
        %s157 = smul.addr %s156, 8
        %s158 = scalar_lea.vmem %s0, %s157
        %p159 = pneg %p36
        %p160 = pneg %p33
        %p161 = pneg %p57
        %p162 = pneg %p54
        %p163 = pneg %p83
        %p164 = pneg %p80
        %s165 = sand.u32 %s70, 1
        %s166 = sand.u32 %s70, 1
        %s167 = smul.addr %s166, 256
        %s168 = scalar_lea.vmem [#allocation4], %s167
        %p169 = pneg %p104
        %p170 = pneg %p101
        %s171 = smul.u32 32, %s15
        %s172 = ssub.s32 125, %s171
        %p173 = scmp.lt.s32.totalorder %s172, 32
        %s174 = scalar_select %p173, %s172, 32
        %s175 = smul.u32 128, %s174
        %p176 = scmp.lt.s32.totalorder %s171, 124
        %s177 = scalar_select %p176, %s171, 124
        %s178 = smul.addr %s177, 8
        %s179 = scalar_lea.vmem %s0, %s178
        %s180 = smul.u32 32, %s15
        %s181 = ssub.s32 125, %s180
        %p182 = scmp.lt.s32.totalorder %s181, 32
        %s183 = scalar_select %p182, %s181, 32
        %s184 = smul.u32 128, %s183
        %s185 = smul.u32 32, %s15
        %s186 = ssub.s32 125, %s185
        %p187 = scmp.lt.s32.totalorder %s186, 32
        %s188 = scalar_select %p187, %s186, 32
        %s189 = smul.u32 128, %s188
        %p190 = scmp.eq.s32.totalorder %s15, 0
        // Predicated region
        $region29: #{conv1d_softmax_etm_legacy.2} parent=27 // pred_check
          %p191 = pneg %p190
        $region30: #{conv1d_softmax_etm_legacy.2} parent=27 // pred_check_branch
          %193 = sbr.rel (%p191) target = $region32
        $region31: #{conv1d_softmax_etm_legacy.2} parent=27 // pred_region
          %vm194 = vcmask 122880
          %195 = vst.msk [vmem:[#allocation2] sm:$0x1] %vm194, -inf
          %196 = vst.msk [vmem:[#allocation3] sm:$0x1] %vm194, 0.0
        $region32: #{conv1d_softmax_etm_legacy.2} parent=27 // pred_fallthru
          _
        %v197 = vld [vmem:[%s179] sm:$0xff]
        %v198 = vld [vmem:[%s179 + $0x8] sm:$0xff]
        %v199 = vld [vmem:[%s179 + $0x10] sm:$0xff]
        %v200 = vld [vmem:[%s179 + $0x18] sm:$0xff]
        %v201 = vld [vmem:[%s179 + $0x20] sm:$0xff]
        %v202 = vld [vmem:[%s179 + $0x28] sm:$0xff]
        %v203 = vld [vmem:[%s179 + $0x30] sm:$0xff]
        %v204 = vld [vmem:[%s179 + $0x38] sm:$0xff]
        %v205 = vld [vmem:[%s179 + $0x40] sm:$0xff]
        %v206 = vld [vmem:[%s179 + $0x48] sm:$0xff]
        %v207 = vld [vmem:[%s179 + $0x50] sm:$0xff]
        %v208 = vld [vmem:[%s179 + $0x58] sm:$0xff]
        %v209 = vld [vmem:[%s179 + $0x60] sm:$0xff]
        %v210 = vld [vmem:[%s179 + $0x68] sm:$0xff]
        %v211 = vld [vmem:[%s179 + $0x70] sm:$0xff]
        %v212 = vld [vmem:[%s179 + $0x78] sm:$0xff]
        %v213 = vld [vmem:[%s179 + $0x80] sm:$0xff]
        %v214 = vld [vmem:[%s179 + $0x88] sm:$0xff]
        %v215 = vld [vmem:[%s179 + $0x90] sm:$0xff]
        %v216 = vld [vmem:[%s179 + $0x98] sm:$0xff]
        %v217 = vld [vmem:[%s179 + $0xa0] sm:$0xff]
        %v218 = vld [vmem:[%s179 + $0xa8] sm:$0xff]
        %v219 = vld [vmem:[%s179 + $0xb0] sm:$0xff]
        %v220 = vld [vmem:[%s179 + $0xb8] sm:$0xff]
        %v221 = vld [vmem:[%s179 + $0xc0] sm:$0xff]
        %v222 = vld [vmem:[%s179 + $0xc8] sm:$0xff]
        %v223 = vld [vmem:[%s179 + $0xd0] sm:$0xff]
        %v224 = vld [vmem:[%s179 + $0xd8] sm:$0xff]
        %v225 = vld [vmem:[%s179 + $0xe0] sm:$0xff]
        %v226 = vld [vmem:[%s179 + $0xe8] sm:$0xff]
        %v227 = vld [vmem:[%s179 + $0xf0] sm:$0xff]
        %v228 = vld [vmem:[%s179 + $0xf8] sm:$0xff]
        %v229 = vld [vmem:[%s1] sm:$0xff]
        %v230 = vld [vmem:[%s1 + $0x8] sm:$0xff]
        %vm231 = vcmask 261120
        %v233 = vsel %vm231, %v197, 0
        %v236 = vsel %vm231, %v198, 0
        %v239 = vsel %vm231, %v199, 0
        %v242 = vsel %vm231, %v200, 0
        %v245 = vsel %vm231, %v201, 0
        %v248 = vsel %vm231, %v202, 0
        %v251 = vsel %vm231, %v203, 0
        %v254 = vsel %vm231, %v204, 0
        %v257 = vsel %vm231, %v205, 0
        %v260 = vsel %vm231, %v206, 0
        %v263 = vsel %vm231, %v207, 0
        %v266 = vsel %vm231, %v208, 0
        %v269 = vsel %vm231, %v209, 0
        %v272 = vsel %vm231, %v210, 0
        %v275 = vsel %vm231, %v211, 0
        %v278 = vsel %vm231, %v212, 0
        %v281 = vsel %vm231, %v213, 0
        %v284 = vsel %vm231, %v214, 0
        %v287 = vsel %vm231, %v215, 0
        %v290 = vsel %vm231, %v216, 0
        %v293 = vsel %vm231, %v217, 0
        %v296 = vsel %vm231, %v218, 0
        %v299 = vsel %vm231, %v219, 0
        %v302 = vsel %vm231, %v220, 0
        %v305 = vsel %vm231, %v221, 0
        %v308 = vsel %vm231, %v222, 0
        %v311 = vsel %vm231, %v223, 0
        %v314 = vsel %vm231, %v224, 0
        %v317 = vsel %vm231, %v225, 0
        %v320 = vsel %vm231, %v226, 0
        %v323 = vsel %vm231, %v227, 0
        %v326 = vsel %vm231, %v228, 0
        %v329 = vsel %vm231, %v229, 0
        %v332 = vsel %vm231, %v230, 0
        %334 = vmatprep.subr.mxu0 0.0
        %335 = vmatpush1.xpose.msra.mxu0 0.0
        %336 = vmatprep.subr.mxu0 0.0
        %337 = vmatpush1.xpose.msra.mxu0 0.0
        %338 = vmatprep.subr.mxu0 0.0
        %339 = vmatpush1.xpose.msra.mxu0 0.0
        %340 = vmatprep.subr.mxu0 0.0
        %341 = vmatpush1.xpose.msra.mxu0 0.0
        %342 = vmatprep.subr.mxu0 0.0
        %343 = vmatpush1.xpose.msra.mxu0 0.0
        %344 = vmatprep.subr.mxu0 0.0
        %345 = vmatpush1.xpose.msra.mxu0 0.0
        %346 = vmatprep.subr.mxu0 0.0
        %347 = vmatpush1.xpose.msra.mxu0 0.0
        %348 = vmatprep.subr.mxu0 0.0
        %349 = vmatpush1.xpose.msra.mxu0 0.0
        %350 = vmatprep.subr.mxu0 0.0
        %351 = vmatpush1.xpose.msra.mxu0 0.0
        %352 = vmatprep.subr.mxu0 0.0
        %353 = vmatpush1.xpose.msra.mxu0 0.0
        %354 = vmatprep.subr.mxu0 0.0
        %355 = vmatpush1.xpose.msra.mxu0 0.0
        %356 = vmatprep.subr.mxu0 0.0
        %357 = vmatpush1.xpose.msra.mxu0 0.0
        %358 = vmatprep.subr.mxu0 0.0
        %359 = vmatpush1.xpose.msra.mxu0 0.0
        %360 = vmatprep.subr.mxu0 0.0
        %361 = vmatpush1.xpose.msra.mxu0 0.0
        %362 = vmatprep.subr.mxu0 0.0
        %363 = vmatpush1.xpose.msra.mxu0 %v332
        %364 = vmatprep.subr.mxu0 0.0
        %365 = vmatpush1.xpose.msra.mxu0 %v329
        %366 = vmatprep.subr.mxu0 0.0
        %367 = vmatpush2.xpose.msra.mxu0 0.0
        %368 = vmatprep.subr.mxu0 0.0
        %369 = vmatpush2.xpose.msra.mxu0 0.0
        %370 = vmatprep.subr.mxu0 0.0
        %371 = vmatpush2.xpose.msra.mxu0 0.0
        %372 = vmatprep.subr.mxu0 0.0
        %373 = vmatpush2.xpose.msra.mxu0 0.0
        %374 = vmatprep.subr.mxu0 0.0
        %375 = vmatpush2.xpose.msra.mxu0 0.0
        %376 = vmatprep.subr.mxu0 0.0
        %377 = vmatpush2.xpose.msra.mxu0 0.0
        %378 = vmatprep.subr.mxu0 0.0
        %379 = vmatpush2.xpose.msra.mxu0 0.0
        %380 = vmatprep.subr.mxu0 0.0
        %381 = vmatpush2.xpose.msra.mxu0 0.0
        %382 = vmatprep.subr.mxu0 0.0
        %383 = vmatpush2.xpose.msra.mxu0 0.0
        %384 = vmatprep.subr.mxu0 0.0
        %385 = vmatpush2.xpose.msra.mxu0 0.0
        %386 = vmatprep.subr.mxu0 0.0
        %387 = vmatpush2.xpose.msra.mxu0 0.0
        %388 = vmatprep.subr.mxu0 0.0
        %389 = vmatpush2.xpose.msra.mxu0 0.0
        %390 = vmatprep.subr.mxu0 0.0
        %391 = vmatpush2.xpose.msra.mxu0 0.0
        %392 = vmatprep.subr.mxu0 0.0
        %393 = vmatpush2.xpose.msra.mxu0 0.0
        %394 = vmatprep.subr.mxu0 0.0
        %395 = vmatpush2.xpose.msra.mxu0 0.0
        %396 = vmatprep.subr.mxu0 0.0
        %397 = vmatpush2.xpose.msra.mxu0 0.0
        %398 = vmatprep.mubr.f32.mxu0 0.0
        %399 = vmatmul.mubr.f32.gmra.mxu0 %v233
        %v400 = vpop.f32.mrf.mxu0
        %v401 = vadd.f32 0.0, %v400
        %v402 = vpop.f32.mrf.mxu0
        %403 = vmatprep.mubr.f32.mxu0 0.0
        %404 = vmatmul.mubr.f32.gmra.mxu0 %v236
        %v405 = vpop.f32.mrf.mxu0
        %v406 = vadd.f32 0.0, %v405
        %v407 = vpop.f32.mrf.mxu0
        %408 = vmatprep.mubr.f32.mxu0 0.0
        %409 = vmatmul.mubr.f32.gmra.mxu0 %v239
        %v410 = vpop.f32.mrf.mxu0
        %v411 = vadd.f32 0.0, %v410
        %v412 = vpop.f32.mrf.mxu0
        %413 = vmatprep.mubr.f32.mxu0 0.0
        %414 = vmatmul.mubr.f32.gmra.mxu0 %v242
        %v415 = vpop.f32.mrf.mxu0
        %v416 = vadd.f32 0.0, %v415
        %v417 = vpop.f32.mrf.mxu0
        %418 = vmatprep.mubr.f32.mxu0 0.0
        %419 = vmatmul.mubr.f32.gmra.mxu0 %v245
        %v420 = vpop.f32.mrf.mxu0
        %v421 = vadd.f32 0.0, %v420
        %v422 = vpop.f32.mrf.mxu0
        %423 = vmatprep.mubr.f32.mxu0 0.0
        %424 = vmatmul.mubr.f32.gmra.mxu0 %v248
        %v425 = vpop.f32.mrf.mxu0
        %v426 = vadd.f32 0.0, %v425
        %v427 = vpop.f32.mrf.mxu0
        %428 = vmatprep.mubr.f32.mxu0 0.0
        %429 = vmatmul.mubr.f32.gmra.mxu0 %v251
        %v430 = vpop.f32.mrf.mxu0
        %v431 = vadd.f32 0.0, %v430
        %v432 = vpop.f32.mrf.mxu0
        %433 = vmatprep.mubr.f32.mxu0 0.0
        %434 = vmatmul.mubr.f32.gmra.mxu0 %v254
        %v435 = vpop.f32.mrf.mxu0
        %v436 = vadd.f32 0.0, %v435
        %v437 = vpop.f32.mrf.mxu0
        %438 = vmatprep.mubr.f32.mxu0 0.0
        %439 = vmatmul.mubr.f32.gmra.mxu0 %v257
        %v440 = vpop.f32.mrf.mxu0
        %v441 = vadd.f32 0.0, %v440
        %v442 = vpop.f32.mrf.mxu0
        %443 = vmatprep.mubr.f32.mxu0 0.0
        %444 = vmatmul.mubr.f32.gmra.mxu0 %v260
        %v445 = vpop.f32.mrf.mxu0
        %v446 = vadd.f32 0.0, %v445
        %v447 = vpop.f32.mrf.mxu0
        %448 = vmatprep.mubr.f32.mxu0 0.0
        %449 = vmatmul.mubr.f32.gmra.mxu0 %v263
        %v450 = vpop.f32.mrf.mxu0
        %v451 = vadd.f32 0.0, %v450
        %v452 = vpop.f32.mrf.mxu0
        %453 = vmatprep.mubr.f32.mxu0 0.0
        %454 = vmatmul.mubr.f32.gmra.mxu0 %v266
        %v455 = vpop.f32.mrf.mxu0
        %v456 = vadd.f32 0.0, %v455
        %v457 = vpop.f32.mrf.mxu0
        %458 = vmatprep.mubr.f32.mxu0 0.0
        %459 = vmatmul.mubr.f32.gmra.mxu0 %v269
        %v460 = vpop.f32.mrf.mxu0
        %v461 = vadd.f32 0.0, %v460
        %v462 = vpop.f32.mrf.mxu0
        %463 = vmatprep.mubr.f32.mxu0 0.0
        %464 = vmatmul.mubr.f32.gmra.mxu0 %v272
        %v465 = vpop.f32.mrf.mxu0
        %v466 = vadd.f32 0.0, %v465
        %v467 = vpop.f32.mrf.mxu0
        %468 = vmatprep.mubr.f32.mxu0 0.0
        %469 = vmatmul.mubr.f32.gmra.mxu0 %v275
        %v470 = vpop.f32.mrf.mxu0
        %v471 = vadd.f32 0.0, %v470
        %v472 = vpop.f32.mrf.mxu0
        %473 = vmatprep.mubr.f32.mxu0 0.0
        %474 = vmatmul.mubr.f32.gmra.mxu0 %v278
        %v475 = vpop.f32.mrf.mxu0
        %v476 = vadd.f32 0.0, %v475
        %v477 = vpop.f32.mrf.mxu0
        %478 = vmatprep.mubr.f32.mxu0 0.0
        %479 = vmatmul.mubr.f32.gmra.mxu0 %v281
        %v480 = vpop.f32.mrf.mxu0
        %v481 = vadd.f32 0.0, %v480
        %v482 = vpop.f32.mrf.mxu0
        %483 = vmatprep.mubr.f32.mxu0 0.0
        %484 = vmatmul.mubr.f32.gmra.mxu0 %v284
        %v485 = vpop.f32.mrf.mxu0
        %v486 = vadd.f32 0.0, %v485
        %v487 = vpop.f32.mrf.mxu0
        %488 = vmatprep.mubr.f32.mxu0 0.0
        %489 = vmatmul.mubr.f32.gmra.mxu0 %v287
        %v490 = vpop.f32.mrf.mxu0
        %v491 = vadd.f32 0.0, %v490
        %v492 = vpop.f32.mrf.mxu0
        %493 = vmatprep.mubr.f32.mxu0 0.0
        %494 = vmatmul.mubr.f32.gmra.mxu0 %v290
        %v495 = vpop.f32.mrf.mxu0
        %v496 = vadd.f32 0.0, %v495
        %v497 = vpop.f32.mrf.mxu0
        %498 = vmatprep.mubr.f32.mxu0 0.0
        %499 = vmatmul.mubr.f32.gmra.mxu0 %v293
        %v500 = vpop.f32.mrf.mxu0
        %v501 = vadd.f32 0.0, %v500
        %v502 = vpop.f32.mrf.mxu0
        %503 = vmatprep.mubr.f32.mxu0 0.0
        %504 = vmatmul.mubr.f32.gmra.mxu0 %v296
        %v505 = vpop.f32.mrf.mxu0
        %v506 = vadd.f32 0.0, %v505
        %v507 = vpop.f32.mrf.mxu0
        %508 = vmatprep.mubr.f32.mxu0 0.0
        %509 = vmatmul.mubr.f32.gmra.mxu0 %v299
        %v510 = vpop.f32.mrf.mxu0
        %v511 = vadd.f32 0.0, %v510
        %v512 = vpop.f32.mrf.mxu0
        %513 = vmatprep.mubr.f32.mxu0 0.0
        %514 = vmatmul.mubr.f32.gmra.mxu0 %v302
        %v515 = vpop.f32.mrf.mxu0
        %v516 = vadd.f32 0.0, %v515
        %v517 = vpop.f32.mrf.mxu0
        %518 = vmatprep.mubr.f32.mxu0 0.0
        %519 = vmatmul.mubr.f32.gmra.mxu0 %v305
        %v520 = vpop.f32.mrf.mxu0
        %v521 = vadd.f32 0.0, %v520
        %v522 = vpop.f32.mrf.mxu0
        %523 = vmatprep.mubr.f32.mxu0 0.0
        %524 = vmatmul.mubr.f32.gmra.mxu0 %v308
        %v525 = vpop.f32.mrf.mxu0
        %v526 = vadd.f32 0.0, %v525
        %v527 = vpop.f32.mrf.mxu0
        %528 = vmatprep.mubr.f32.mxu0 0.0
        %529 = vmatmul.mubr.f32.gmra.mxu0 %v311
        %v530 = vpop.f32.mrf.mxu0
        %v531 = vadd.f32 0.0, %v530
        %v532 = vpop.f32.mrf.mxu0
        %533 = vmatprep.mubr.f32.mxu0 0.0
        %534 = vmatmul.mubr.f32.gmra.mxu0 %v314
        %v535 = vpop.f32.mrf.mxu0
        %v536 = vadd.f32 0.0, %v535
        %v537 = vpop.f32.mrf.mxu0
        %538 = vmatprep.mubr.f32.mxu0 0.0
        %539 = vmatmul.mubr.f32.gmra.mxu0 %v317
        %v540 = vpop.f32.mrf.mxu0
        %v541 = vadd.f32 0.0, %v540
        %v542 = vpop.f32.mrf.mxu0
        %543 = vmatprep.mubr.f32.mxu0 0.0
        %544 = vmatmul.mubr.f32.gmra.mxu0 %v320
        %v545 = vpop.f32.mrf.mxu0
        %v546 = vadd.f32 0.0, %v545
        %v547 = vpop.f32.mrf.mxu0
        %548 = vmatprep.mubr.f32.mxu0 0.0
        %549 = vmatmul.mubr.f32.gmra.mxu0 %v323
        %v550 = vpop.f32.mrf.mxu0
        %v551 = vadd.f32 0.0, %v550
        %v552 = vpop.f32.mrf.mxu0
        %553 = vmatprep.mubr.f32.mxu0 0.0
        %554 = vmatmul.mubr.f32.gmra.mxu0 %v326
        %v555 = vpop.f32.mrf.mxu0
        %v556 = vadd.f32 0.0, %v555
        %v557 = vpop.f32.mrf.mxu0
        %558 = vdwg.mxu0
        %vm559 = vcmask 130048
        %560 = vst.msk [vmem:[%s168] sm:$0xff] %vm559, %v401
        %561 = vst.msk [vmem:[%s168 + $0x8] sm:$0xff] %vm559, %v406
        %562 = vst.msk [vmem:[%s168 + $0x10] sm:$0xff] %vm559, %v411
        %563 = vst.msk [vmem:[%s168 + $0x18] sm:$0xff] %vm559, %v416
        %564 = vst.msk [vmem:[%s168 + $0x20] sm:$0xff] %vm559, %v421
        %565 = vst.msk [vmem:[%s168 + $0x28] sm:$0xff] %vm559, %v426
        %566 = vst.msk [vmem:[%s168 + $0x30] sm:$0xff] %vm559, %v431
        %567 = vst.msk [vmem:[%s168 + $0x38] sm:$0xff] %vm559, %v436
        %568 = vst.msk [vmem:[%s168 + $0x40] sm:$0xff] %vm559, %v441
        %569 = vst.msk [vmem:[%s168 + $0x48] sm:$0xff] %vm559, %v446
        %570 = vst.msk [vmem:[%s168 + $0x50] sm:$0xff] %vm559, %v451
        %571 = vst.msk [vmem:[%s168 + $0x58] sm:$0xff] %vm559, %v456
        %572 = vst.msk [vmem:[%s168 + $0x60] sm:$0xff] %vm559, %v461
        %573 = vst.msk [vmem:[%s168 + $0x68] sm:$0xff] %vm559, %v466
        %574 = vst.msk [vmem:[%s168 + $0x70] sm:$0xff] %vm559, %v471
        %575 = vst.msk [vmem:[%s168 + $0x78] sm:$0xff] %vm559, %v476
        %576 = vst.msk [vmem:[%s168 + $0x80] sm:$0xff] %vm559, %v481
        %577 = vst.msk [vmem:[%s168 + $0x88] sm:$0xff] %vm559, %v486
        %578 = vst.msk [vmem:[%s168 + $0x90] sm:$0xff] %vm559, %v491
        %579 = vst.msk [vmem:[%s168 + $0x98] sm:$0xff] %vm559, %v496
        %580 = vst.msk [vmem:[%s168 + $0xa0] sm:$0xff] %vm559, %v501
        %581 = vst.msk [vmem:[%s168 + $0xa8] sm:$0xff] %vm559, %v506
        %582 = vst.msk [vmem:[%s168 + $0xb0] sm:$0xff] %vm559, %v511
        %583 = vst.msk [vmem:[%s168 + $0xb8] sm:$0xff] %vm559, %v516
        %584 = vst.msk [vmem:[%s168 + $0xc0] sm:$0xff] %vm559, %v521
        %585 = vst.msk [vmem:[%s168 + $0xc8] sm:$0xff] %vm559, %v526
        %586 = vst.msk [vmem:[%s168 + $0xd0] sm:$0xff] %vm559, %v531
        %587 = vst.msk [vmem:[%s168 + $0xd8] sm:$0xff] %vm559, %v536
        %588 = vst.msk [vmem:[%s168 + $0xe0] sm:$0xff] %vm559, %v541
        %589 = vst.msk [vmem:[%s168 + $0xe8] sm:$0xff] %vm559, %v546
        %590 = vst.msk [vmem:[%s168 + $0xf0] sm:$0xff] %vm559, %v551
        %591 = vst.msk [vmem:[%s168 + $0xf8] sm:$0xff] %vm559, %v556
        %s592 = smul.u32 %s15, 256
        %v593 = vlaneseq
        %v594 = vshrl.u32 %v593, 7
        %v595 = vadd.s32 %v594, 8
        %v596 = vadd.s32 %v594, 16
        %v597 = vadd.s32 %v594, 24
        %v598 = vadd.s32 %v594, 32
        %v599 = vadd.s32 %v594, 40
        %v600 = vadd.s32 %v594, 48
        %v601 = vadd.s32 %v594, 56
        %v602 = vadd.s32 %v594, 64
        %v603 = vadd.s32 %v594, 72
        %v604 = vadd.s32 %v594, 80
        %v605 = vadd.s32 %v594, 88
        %v606 = vadd.s32 %v594, 96
        %v607 = vadd.s32 %v594, 104
        %v608 = vadd.s32 %v594, 112
        %v609 = vadd.s32 %v594, 120
        %v610 = vadd.s32 %v594, 128
        %v611 = vadd.s32 %v594, 136
        %v612 = vadd.s32 %v594, 144
        %v613 = vadd.s32 %v594, 152
        %v614 = vadd.s32 %v594, 160
        %v615 = vadd.s32 %v594, 168
        %v616 = vadd.s32 %v594, 176
        %v617 = vadd.s32 %v594, 184
        %v618 = vadd.s32 %v594, 192
        %v619 = vadd.s32 %v594, 200
        %v620 = vadd.s32 %v594, 208
        %v621 = vadd.s32 %v594, 216
        %v622 = vadd.s32 %v594, 224
        %v623 = vadd.s32 %v594, 232
        %v624 = vadd.s32 %v594, 240
        %v625 = vadd.s32 %v594, 248
        %v626 = vstv %s592
        %v627 = vadd.s32 %v626, %v594
        %v628 = vadd.s32 %v626, %v595
        %v629 = vadd.s32 %v626, %v596
        %v630 = vadd.s32 %v626, %v597
        %v631 = vadd.s32 %v626, %v598
        %v632 = vadd.s32 %v626, %v599
        %v633 = vadd.s32 %v626, %v600
        %v634 = vadd.s32 %v626, %v601
        %v635 = vadd.s32 %v626, %v602
        %v636 = vadd.s32 %v626, %v603
        %v637 = vadd.s32 %v626, %v604
        %v638 = vadd.s32 %v626, %v605
        %v639 = vadd.s32 %v626, %v606
        %v640 = vadd.s32 %v626, %v607
        %v641 = vadd.s32 %v626, %v608
        %v642 = vadd.s32 %v626, %v609
        %v643 = vadd.s32 %v626, %v610
        %v644 = vadd.s32 %v626, %v611
        %v645 = vadd.s32 %v626, %v612
        %v646 = vadd.s32 %v626, %v613
        %v647 = vadd.s32 %v626, %v614
        %v648 = vadd.s32 %v626, %v615
        %v649 = vadd.s32 %v626, %v616
        %v650 = vadd.s32 %v626, %v617
        %v651 = vadd.s32 %v626, %v618
        %v652 = vadd.s32 %v626, %v619
        %v653 = vadd.s32 %v626, %v620
        %v654 = vadd.s32 %v626, %v621
        %v655 = vadd.s32 %v626, %v622
        %v656 = vadd.s32 %v626, %v623
        %v657 = vadd.s32 %v626, %v624
        %v658 = vadd.s32 %v626, %v625
        %vm659 = vcmp.lt.s32.totalorder %v627, 1000
        %vm660 = vcmp.lt.s32.totalorder %v628, 1000
        %vm661 = vcmp.lt.s32.totalorder %v629, 1000
        %vm662 = vcmp.lt.s32.totalorder %v630, 1000
        %vm663 = vcmp.lt.s32.totalorder %v631, 1000
        %vm664 = vcmp.lt.s32.totalorder %v632, 1000
        %vm665 = vcmp.lt.s32.totalorder %v633, 1000
        %vm666 = vcmp.lt.s32.totalorder %v634, 1000
        %vm667 = vcmp.lt.s32.totalorder %v635, 1000
        %vm668 = vcmp.lt.s32.totalorder %v636, 1000
        %vm669 = vcmp.lt.s32.totalorder %v637, 1000
        %vm670 = vcmp.lt.s32.totalorder %v638, 1000
        %vm671 = vcmp.lt.s32.totalorder %v639, 1000
        %vm672 = vcmp.lt.s32.totalorder %v640, 1000
        %vm673 = vcmp.lt.s32.totalorder %v641, 1000
        %vm674 = vcmp.lt.s32.totalorder %v642, 1000
        %vm675 = vcmp.lt.s32.totalorder %v643, 1000
        %vm676 = vcmp.lt.s32.totalorder %v644, 1000
        %vm677 = vcmp.lt.s32.totalorder %v645, 1000
        %vm678 = vcmp.lt.s32.totalorder %v646, 1000
        %vm679 = vcmp.lt.s32.totalorder %v647, 1000
        %vm680 = vcmp.lt.s32.totalorder %v648, 1000
        %vm681 = vcmp.lt.s32.totalorder %v649, 1000
        %vm682 = vcmp.lt.s32.totalorder %v650, 1000
        %vm683 = vcmp.lt.s32.totalorder %v651, 1000
        %vm684 = vcmp.lt.s32.totalorder %v652, 1000
        %vm685 = vcmp.lt.s32.totalorder %v653, 1000
        %vm686 = vcmp.lt.s32.totalorder %v654, 1000
        %vm687 = vcmp.lt.s32.totalorder %v655, 1000
        %vm688 = vcmp.lt.s32.totalorder %v656, 1000
        %vm689 = vcmp.lt.s32.totalorder %v657, 1000
        %vm690 = vcmp.lt.s32.totalorder %v658, 1000
        %v691 = vsel %vm659, 1, 0
        %v692 = vsel %vm660, 1, 0
        %v693 = vsel %vm661, 1, 0
        %v694 = vsel %vm662, 1, 0
        %v695 = vsel %vm663, 1, 0
        %v696 = vsel %vm664, 1, 0
        %v697 = vsel %vm665, 1, 0
        %v698 = vsel %vm666, 1, 0
        %v699 = vsel %vm667, 1, 0
        %v700 = vsel %vm668, 1, 0
        %v701 = vsel %vm669, 1, 0
        %v702 = vsel %vm670, 1, 0
        %v703 = vsel %vm671, 1, 0
        %v704 = vsel %vm672, 1, 0
        %v705 = vsel %vm673, 1, 0
        %v706 = vsel %vm674, 1, 0
        %v707 = vsel %vm675, 1, 0
        %v708 = vsel %vm676, 1, 0
        %v709 = vsel %vm677, 1, 0
        %v710 = vsel %vm678, 1, 0
        %v711 = vsel %vm679, 1, 0
        %v712 = vsel %vm680, 1, 0
        %v713 = vsel %vm681, 1, 0
        %v714 = vsel %vm682, 1, 0
        %v715 = vsel %vm683, 1, 0
        %v716 = vsel %vm684, 1, 0
        %v717 = vsel %vm685, 1, 0
        %v718 = vsel %vm686, 1, 0
        %v719 = vsel %vm687, 1, 0
        %v720 = vsel %vm688, 1, 0
        %v721 = vsel %vm689, 1, 0
        %v722 = vsel %vm690, 1, 0
        %vm723 = vcmp.eq.s32.totalorder %v691, 1
        %vm724 = vcmp.eq.s32.totalorder %v692, 1
        %vm725 = vcmp.eq.s32.totalorder %v693, 1
        %vm726 = vcmp.eq.s32.totalorder %v694, 1
        %vm727 = vcmp.eq.s32.totalorder %v695, 1
        %vm728 = vcmp.eq.s32.totalorder %v696, 1
        %vm729 = vcmp.eq.s32.totalorder %v697, 1
        %vm730 = vcmp.eq.s32.totalorder %v698, 1
        %vm731 = vcmp.eq.s32.totalorder %v699, 1
        %vm732 = vcmp.eq.s32.totalorder %v700, 1
        %vm733 = vcmp.eq.s32.totalorder %v701, 1
        %vm734 = vcmp.eq.s32.totalorder %v702, 1
        %vm735 = vcmp.eq.s32.totalorder %v703, 1
        %vm736 = vcmp.eq.s32.totalorder %v704, 1
        %vm737 = vcmp.eq.s32.totalorder %v705, 1
        %vm738 = vcmp.eq.s32.totalorder %v706, 1
        %vm739 = vcmp.eq.s32.totalorder %v707, 1
        %vm740 = vcmp.eq.s32.totalorder %v708, 1
        %vm741 = vcmp.eq.s32.totalorder %v709, 1
        %vm742 = vcmp.eq.s32.totalorder %v710, 1
        %vm743 = vcmp.eq.s32.totalorder %v711, 1
        %vm744 = vcmp.eq.s32.totalorder %v712, 1
        %vm745 = vcmp.eq.s32.totalorder %v713, 1
        %vm746 = vcmp.eq.s32.totalorder %v714, 1
        %vm747 = vcmp.eq.s32.totalorder %v715, 1
        %vm748 = vcmp.eq.s32.totalorder %v716, 1
        %vm749 = vcmp.eq.s32.totalorder %v717, 1
        %vm750 = vcmp.eq.s32.totalorder %v718, 1
        %vm751 = vcmp.eq.s32.totalorder %v719, 1
        %vm752 = vcmp.eq.s32.totalorder %v720, 1
        %vm753 = vcmp.eq.s32.totalorder %v721, 1
        %vm754 = vcmp.eq.s32.totalorder %v722, 1
        %v755 = vsel %vm723, %v401, -inf
        %v756 = vsel %vm724, %v406, -inf
        %v757 = vsel %vm725, %v411, -inf
        %v758 = vsel %vm726, %v416, -inf
        %v759 = vsel %vm727, %v421, -inf
        %v760 = vsel %vm728, %v426, -inf
        %v761 = vsel %vm729, %v431, -inf
        %v762 = vsel %vm730, %v436, -inf
        %v763 = vsel %vm731, %v441, -inf
        %v764 = vsel %vm732, %v446, -inf
        %v765 = vsel %vm733, %v451, -inf
        %v766 = vsel %vm734, %v456, -inf
        %v767 = vsel %vm735, %v461, -inf
        %v768 = vsel %vm736, %v466, -inf
        %v769 = vsel %vm737, %v471, -inf
        %v770 = vsel %vm738, %v476, -inf
        %v771 = vsel %vm739, %v481, -inf
        %v772 = vsel %vm740, %v486, -inf
        %v773 = vsel %vm741, %v491, -inf
        %v774 = vsel %vm742, %v496, -inf
        %v775 = vsel %vm743, %v501, -inf
        %v776 = vsel %vm744, %v506, -inf
        %v777 = vsel %vm745, %v511, -inf
        %v778 = vsel %vm746, %v516, -inf
        %v779 = vsel %vm747, %v521, -inf
        %v780 = vsel %vm748, %v526, -inf
        %v781 = vsel %vm749, %v531, -inf
        %v782 = vsel %vm750, %v536, -inf
        %v783 = vsel %vm751, %v541, -inf
        %v784 = vsel %vm752, %v546, -inf
        %v785 = vsel %vm753, %v551, -inf
        %v786 = vsel %vm754, %v556, -inf
        %v787 = vld [vmem:[#allocation2] sm:$0x1]
        %v788 = vsel %vm559, %v755, -inf
        %v789 = vsel %vm559, %v756, -inf
        %v790 = vsel %vm559, %v757, -inf
        %v791 = vsel %vm559, %v758, -inf
        %v792 = vsel %vm559, %v759, -inf
        %v793 = vmax.f32 %v788, %v792
        %v794 = vsel %vm559, %v760, -inf
        %v795 = vmax.f32 %v789, %v794
        %v796 = vsel %vm559, %v761, -inf
        %v797 = vmax.f32 %v790, %v796
        %v798 = vsel %vm559, %v762, -inf
        %v799 = vmax.f32 %v791, %v798
        %v800 = vsel %vm559, %v763, -inf
        %v801 = vmax.f32 %v793, %v800
        %v802 = vsel %vm559, %v764, -inf
        %v803 = vmax.f32 %v795, %v802
        %v804 = vsel %vm559, %v765, -inf
        %v805 = vmax.f32 %v797, %v804
        %v806 = vsel %vm559, %v766, -inf
        %v807 = vmax.f32 %v799, %v806
        %v808 = vsel %vm559, %v767, -inf
        %v809 = vmax.f32 %v801, %v808
        %v810 = vsel %vm559, %v768, -inf
        %v811 = vmax.f32 %v803, %v810
        %v812 = vsel %vm559, %v769, -inf
        %v813 = vmax.f32 %v805, %v812
        %v814 = vsel %vm559, %v770, -inf
        %v815 = vmax.f32 %v807, %v814
        %v816 = vsel %vm559, %v771, -inf
        %v817 = vmax.f32 %v809, %v816
        %v818 = vsel %vm559, %v772, -inf
        %v819 = vmax.f32 %v811, %v818
        %v820 = vsel %vm559, %v773, -inf
        %v821 = vmax.f32 %v813, %v820
        %v822 = vsel %vm559, %v774, -inf
        %v823 = vmax.f32 %v815, %v822
        %v824 = vsel %vm559, %v775, -inf
        %v825 = vmax.f32 %v817, %v824
        %v826 = vsel %vm559, %v776, -inf
        %v827 = vmax.f32 %v819, %v826
        %v828 = vsel %vm559, %v777, -inf
        %v829 = vmax.f32 %v821, %v828
        %v830 = vsel %vm559, %v778, -inf
        %v831 = vmax.f32 %v823, %v830
        %v832 = vsel %vm559, %v779, -inf
        %v833 = vmax.f32 %v825, %v832
        %v834 = vsel %vm559, %v780, -inf
        %v835 = vmax.f32 %v827, %v834
        %v836 = vsel %vm559, %v781, -inf
        %v837 = vmax.f32 %v829, %v836
        %v838 = vsel %vm559, %v782, -inf
        %v839 = vmax.f32 %v831, %v838
        %v840 = vsel %vm559, %v783, -inf
        %v841 = vmax.f32 %v833, %v840
        %v842 = vsel %vm559, %v784, -inf
        %v843 = vmax.f32 %v835, %v842
        %v844 = vsel %vm559, %v785, -inf
        %v845 = vmax.f32 %v837, %v844
        %v846 = vsel %vm559, %v786, -inf
        %v847 = vmax.f32 %v839, %v846
        %v848 = vmax.f32 %v841, %v843
        %v849 = vmax.f32 %v845, %v847
        %v850 = vmax.f32 %v848, %v849
        %v851 = vrot.slane %v850, 4
        %v852 = vmax.f32 %v850, %v851
        %v853 = vrot.slane %v852, 2
        %v854 = vmax.f32 %v852, %v853
        %v855 = vrot.slane %v854, 1
        %v856 = vmax.f32 %v854, %v855
        %v857 = vmax.f32 %v787, %v856
        %v858 = vld [vmem:[#allocation3] sm:$0x1]
        %v859 = vsub.f32 %v787, %v857
        %v860 = vmul.f32 %v859, 1.442695
        %v861 = vpow.pop %v860
        %v862 = vmul.f32 %v858, %v861
        %v864 = vlaneseq
        %v865 = vshrl.u32 %v864, 7
        %v866 = vsub.s32 0, %v865
        %v867 = vrot.slane %v857, %v866
        %v869 = vsub.f32 %v755, %v867
        %v870 = vsub.f32 %v756, %v867
        %v871 = vsub.f32 %v757, %v867
        %v872 = vsub.f32 %v758, %v867
        %v873 = vsub.f32 %v759, %v867
        %v874 = vsub.f32 %v760, %v867
        %v875 = vsub.f32 %v761, %v867
        %v876 = vsub.f32 %v762, %v867
        %v877 = vsub.f32 %v763, %v867
        %v878 = vsub.f32 %v764, %v867
        %v879 = vsub.f32 %v765, %v867
        %v880 = vsub.f32 %v766, %v867
        %v881 = vsub.f32 %v767, %v867
        %v882 = vsub.f32 %v768, %v867
        %v883 = vsub.f32 %v769, %v867
        %v884 = vsub.f32 %v770, %v867
        %v885 = vsub.f32 %v771, %v867
        %v886 = vsub.f32 %v772, %v867
        %v887 = vsub.f32 %v773, %v867
        %v888 = vsub.f32 %v774, %v867
        %v889 = vsub.f32 %v775, %v867
        %v890 = vsub.f32 %v776, %v867
        %v891 = vsub.f32 %v777, %v867
        %v892 = vsub.f32 %v778, %v867
        %v893 = vsub.f32 %v779, %v867
        %v894 = vsub.f32 %v780, %v867
        %v895 = vsub.f32 %v781, %v867
        %v896 = vsub.f32 %v782, %v867
        %v897 = vsub.f32 %v783, %v867
        %v898 = vsub.f32 %v784, %v867
        %v899 = vsub.f32 %v785, %v867
        %v900 = vsub.f32 %v786, %v867
        %v901 = vmul.f32 %v869, 1.442695
        %v902 = vpow.pop %v901
        %v903 = vmul.f32 %v870, 1.442695
        %v904 = vpow.pop %v903
        %v905 = vmul.f32 %v871, 1.442695
        %v906 = vpow.pop %v905
        %v907 = vmul.f32 %v872, 1.442695
        %v908 = vpow.pop %v907
        %v909 = vmul.f32 %v873, 1.442695
        %v910 = vpow.pop %v909
        %v911 = vmul.f32 %v874, 1.442695
        %v912 = vpow.pop %v911
        %v913 = vmul.f32 %v875, 1.442695
        %v914 = vpow.pop %v913
        %v915 = vmul.f32 %v876, 1.442695
        %v916 = vpow.pop %v915
        %v917 = vmul.f32 %v877, 1.442695
        %v918 = vpow.pop %v917
        %v919 = vmul.f32 %v878, 1.442695
        %v920 = vpow.pop %v919
        %v921 = vmul.f32 %v879, 1.442695
        %v922 = vpow.pop %v921
        %v923 = vmul.f32 %v880, 1.442695
        %v924 = vpow.pop %v923
        %v925 = vmul.f32 %v881, 1.442695
        %v926 = vpow.pop %v925
        %v927 = vmul.f32 %v882, 1.442695
        %v928 = vpow.pop %v927
        %v929 = vmul.f32 %v883, 1.442695
        %v930 = vpow.pop %v929
        %v931 = vmul.f32 %v884, 1.442695
        %v932 = vpow.pop %v931
        %v933 = vmul.f32 %v885, 1.442695
        %v934 = vpow.pop %v933
        %v935 = vmul.f32 %v886, 1.442695
        %v936 = vpow.pop %v935
        %v937 = vmul.f32 %v887, 1.442695
        %v938 = vpow.pop %v937
        %v939 = vmul.f32 %v888, 1.442695
        %v940 = vpow.pop %v939
        %v941 = vmul.f32 %v889, 1.442695
        %v942 = vpow.pop %v941
        %v943 = vmul.f32 %v890, 1.442695
        %v944 = vpow.pop %v943
        %v945 = vmul.f32 %v891, 1.442695
        %v946 = vpow.pop %v945
        %v947 = vmul.f32 %v892, 1.442695
        %v948 = vpow.pop %v947
        %v949 = vmul.f32 %v893, 1.442695
        %v950 = vpow.pop %v949
        %v951 = vmul.f32 %v894, 1.442695
        %v952 = vpow.pop %v951
        %v953 = vmul.f32 %v895, 1.442695
        %v954 = vpow.pop %v953
        %v955 = vmul.f32 %v896, 1.442695
        %v956 = vpow.pop %v955
        %v957 = vmul.f32 %v897, 1.442695
        %v958 = vpow.pop %v957
        %v959 = vmul.f32 %v898, 1.442695
        %v960 = vpow.pop %v959
        %v961 = vmul.f32 %v899, 1.442695
        %v962 = vpow.pop %v961
        %v963 = vmul.f32 %v900, 1.442695
        %v964 = vpow.pop %v963
        %v965 = vsel %vm559, %v902, 0.0
        %v966 = vsel %vm559, %v904, 0.0
        %v967 = vadd.f32 %v965, %v966
        %v968 = vsel %vm559, %v906, 0.0
        %v969 = vadd.f32 %v967, %v968
        %v970 = vsel %vm559, %v908, 0.0
        %v971 = vadd.f32 %v969, %v970
        %v972 = vsel %vm559, %v910, 0.0
        %v973 = vadd.f32 %v971, %v972
        %v974 = vsel %vm559, %v912, 0.0
        %v975 = vadd.f32 %v973, %v974
        %v976 = vsel %vm559, %v914, 0.0
        %v977 = vadd.f32 %v975, %v976
        %v978 = vsel %vm559, %v916, 0.0
        %v979 = vadd.f32 %v977, %v978
        %v980 = vsel %vm559, %v918, 0.0
        %v981 = vadd.f32 %v979, %v980
        %v982 = vsel %vm559, %v920, 0.0
        %v983 = vadd.f32 %v981, %v982
        %v984 = vsel %vm559, %v922, 0.0
        %v985 = vadd.f32 %v983, %v984
        %v986 = vsel %vm559, %v924, 0.0
        %v987 = vadd.f32 %v985, %v986
        %v988 = vsel %vm559, %v926, 0.0
        %v989 = vadd.f32 %v987, %v988
        %v990 = vsel %vm559, %v928, 0.0
        %v991 = vadd.f32 %v989, %v990
        %v992 = vsel %vm559, %v930, 0.0
        %v993 = vadd.f32 %v991, %v992
        %v994 = vsel %vm559, %v932, 0.0
        %v995 = vadd.f32 %v993, %v994
        %v996 = vsel %vm559, %v934, 0.0
        %v997 = vadd.f32 %v995, %v996
        %v998 = vsel %vm559, %v936, 0.0
        %v999 = vadd.f32 %v997, %v998
        %v1000 = vsel %vm559, %v938, 0.0
        %v1001 = vadd.f32 %v999, %v1000
        %v1002 = vsel %vm559, %v940, 0.0
        %v1003 = vadd.f32 %v1001, %v1002
        %v1004 = vsel %vm559, %v942, 0.0
        %v1005 = vadd.f32 %v1003, %v1004
        %v1006 = vsel %vm559, %v944, 0.0
        %v1007 = vadd.f32 %v1005, %v1006
        %v1008 = vsel %vm559, %v946, 0.0
        %v1009 = vadd.f32 %v1007, %v1008
        %v1010 = vsel %vm559, %v948, 0.0
        %v1011 = vadd.f32 %v1009, %v1010
        %v1012 = vsel %vm559, %v950, 0.0
        %v1013 = vadd.f32 %v1011, %v1012
        %v1014 = vsel %vm559, %v952, 0.0
        %v1015 = vadd.f32 %v1013, %v1014
        %v1016 = vsel %vm559, %v954, 0.0
        %v1017 = vadd.f32 %v1015, %v1016
        %v1018 = vsel %vm559, %v956, 0.0
        %v1019 = vadd.f32 %v1017, %v1018
        %v1020 = vsel %vm559, %v958, 0.0
        %v1021 = vadd.f32 %v1019, %v1020
        %v1022 = vsel %vm559, %v960, 0.0
        %v1023 = vadd.f32 %v1021, %v1022
        %v1024 = vsel %vm559, %v962, 0.0
        %v1025 = vadd.f32 %v1023, %v1024
        %v1026 = vsel %vm559, %v964, 0.0
        %v1027 = vadd.f32 %v1025, %v1026
        %v1028 = vrot.slane %v1027, 4
        %v1029 = vadd.f32 %v1027, %v1028
        %v1030 = vrot.slane %v1029, 2
        %v1031 = vadd.f32 %v1029, %v1030
        %v1032 = vrot.slane %v1031, 1
        %v1033 = vadd.f32 %v1031, %v1032
        %v1034 = vadd.f32 %v862, %v1033
        %vm1035 = vcmask 122880
        %1036 = vst.msk [vmem:[#allocation3] sm:$0x1] %vm1035, %v1034
        %1037 = vst.msk [vmem:[#allocation2] sm:$0x1] %vm1035, %v857
        %p1038 = scmp.eq.s32.totalorder %s15, 3
        // Predicated region
        $region33: #{conv1d_softmax_etm_legacy.2} parent=27 // pred_check
          %p1039 = pneg %p1038
        $region34: #{conv1d_softmax_etm_legacy.2} parent=27 // pred_check_branch
          %1041 = sbr.rel (%p1039) target = $region36
        $region35: #{conv1d_softmax_etm_legacy.2} parent=27 // pred_region
          %v1042 = vld [vmem:[#allocation2] sm:$0x1]
          %v1043 = vld [vmem:[#allocation3] sm:$0x1]
          %v1044 = vlog2.pop %v1043
          %v1045 = vmul.f32 %v1044, 0.6931472
          %v1046 = vadd.f32 %v1042, %v1045
          %1047 = vst.msk [vmem:[%s3] sm:$0x1] %vm1035, %v1046
        $region36: #{conv1d_softmax_etm_legacy.2} parent=27 // pred_fallthru
          _
        %s1048 = sand.u32 %s70, 1
        %s1049 = sand.u32 %s70, 1
        %s1050 = smul.addr %s1049, 256
        %s1051 = scalar_lea.vmem [#allocation4], %s1050
        // Predicated region
        $region37: #{conv1d_softmax_etm_legacy.2} parent=27 // pred_check
          %p1052 = pneg %p80
        $region38: #{conv1d_softmax_etm_legacy.2} parent=27 // pred_check_branch
          %1054 = sbr.rel (%p1052) target = $region40
        $region39: #{conv1d_softmax_etm_legacy.2} parent=27 // pred_region
          %s1055 = smul.u32 32, %s15
          %s1056 = ssub.s32 125, %s1055
          %p1057 = scmp.lt.s32.totalorder %s1056, 32
          %s1058 = scalar_select %p1057, %s1056, 32
          %s1059 = smul.u32 128, %s1058
          %p1060 = scmp.ne.s32.totalorder 0, %s1059
          %s1061 = smul.addr %s1055, 8
          %s1062 = scalar_lea.vmem %s2, %s1061
          // Predicated region
          $region41: #{conv1d_softmax_etm_legacy.2} parent=39 // pred_check
            %p1063 = pneg %p1060
          $region42: #{conv1d_softmax_etm_legacy.2} parent=39 // pred_check_branch
            %1065 = sbr.rel (%p1063) target = $region44
          $region43: #{conv1d_softmax_etm_legacy.2} parent=39 // pred_region
            // Predicated region
            $region45: #{conv1d_softmax_etm_legacy.2} parent=43 // pred_check
              _
            $region46: #{conv1d_softmax_etm_legacy.2} parent=43 // pred_check_branch
              %1067 = sbr.rel (0) target = $region48
            $region47: #{conv1d_softmax_etm_legacy.2} parent=43 // pred_region
              // Predicated region
              $region67: #{conv1d_softmax_etm_legacy.2} parent=47 // pred_check
                _
              $region68: #{conv1d_softmax_etm_legacy.2} parent=47 // pred_check_branch
                %1179 = sbr.rel (0) target = $region70
              $region69: #{conv1d_softmax_etm_legacy.2} parent=47 // pred_region
                %s1180 = sshrl.u32 %s1058, 5
                // While loop
                $region71: #{conv1d_softmax_etm_legacy.2} parent=69 // loop_pre_header
                  _
                $region72: #{conv1d_softmax_etm_legacy.2} parent=69 // loop_header
                  %s1182 = sphi 0, %s1184
                  %p1183 = scmp.ge.s32.totalorder %s1182, %s1180
                  %s1187 = sphi 0, %s1256
                  %s1188 = sphi %s1051, %s1259
                  %s1189 = sphi %s1062, %s1260
                $region73: #{conv1d_softmax_etm_legacy.2} parent=69 // loop_header_branch
                  %1186 = sbr.rel (%p1183) target = $region77
                $region74: #{conv1d_softmax_etm_legacy.2} parent=69 // loop_body
                  %v1190 = vld [vmem:[%s1188] sm:$0xff]
                  %1191 = vst [vmem:[%s1189] sm:$0xff] %v1190
                  %v1192 = vld [vmem:[%s1188 + $0x8] sm:$0xff]
                  %1193 = vst [vmem:[%s1189 + $0x8] sm:$0xff] %v1192
                  %v1194 = vld [vmem:[%s1188 + $0x10] sm:$0xff]
                  %1195 = vst [vmem:[%s1189 + $0x10] sm:$0xff] %v1194
                  %v1196 = vld [vmem:[%s1188 + $0x18] sm:$0xff]
                  %1197 = vst [vmem:[%s1189 + $0x18] sm:$0xff] %v1196
                  %v1198 = vld [vmem:[%s1188 + $0x20] sm:$0xff]
                  %1199 = vst [vmem:[%s1189 + $0x20] sm:$0xff] %v1198
                  %v1200 = vld [vmem:[%s1188 + $0x28] sm:$0xff]
                  %1201 = vst [vmem:[%s1189 + $0x28] sm:$0xff] %v1200
                  %v1202 = vld [vmem:[%s1188 + $0x30] sm:$0xff]
                  %1203 = vst [vmem:[%s1189 + $0x30] sm:$0xff] %v1202
                  %v1204 = vld [vmem:[%s1188 + $0x38] sm:$0xff]
                  %1205 = vst [vmem:[%s1189 + $0x38] sm:$0xff] %v1204
                  %v1206 = vld [vmem:[%s1188 + $0x40] sm:$0xff]
                  %1207 = vst [vmem:[%s1189 + $0x40] sm:$0xff] %v1206
                  %v1208 = vld [vmem:[%s1188 + $0x48] sm:$0xff]
                  %1209 = vst [vmem:[%s1189 + $0x48] sm:$0xff] %v1208
                  %v1210 = vld [vmem:[%s1188 + $0x50] sm:$0xff]
                  %1211 = vst [vmem:[%s1189 + $0x50] sm:$0xff] %v1210
                  %v1212 = vld [vmem:[%s1188 + $0x58] sm:$0xff]
                  %1213 = vst [vmem:[%s1189 + $0x58] sm:$0xff] %v1212
                  %v1214 = vld [vmem:[%s1188 + $0x60] sm:$0xff]
                  %1215 = vst [vmem:[%s1189 + $0x60] sm:$0xff] %v1214
                  %v1216 = vld [vmem:[%s1188 + $0x68] sm:$0xff]
                  %1217 = vst [vmem:[%s1189 + $0x68] sm:$0xff] %v1216
                  %v1218 = vld [vmem:[%s1188 + $0x70] sm:$0xff]
                  %1219 = vst [vmem:[%s1189 + $0x70] sm:$0xff] %v1218
                  %v1220 = vld [vmem:[%s1188 + $0x78] sm:$0xff]
                  %1221 = vst [vmem:[%s1189 + $0x78] sm:$0xff] %v1220
                  %v1222 = vld [vmem:[%s1188 + $0x80] sm:$0xff]
                  %1223 = vst [vmem:[%s1189 + $0x80] sm:$0xff] %v1222
                  %v1224 = vld [vmem:[%s1188 + $0x88] sm:$0xff]
                  %1225 = vst [vmem:[%s1189 + $0x88] sm:$0xff] %v1224
                  %v1226 = vld [vmem:[%s1188 + $0x90] sm:$0xff]
                  %1227 = vst [vmem:[%s1189 + $0x90] sm:$0xff] %v1226
                  %v1228 = vld [vmem:[%s1188 + $0x98] sm:$0xff]
                  %1229 = vst [vmem:[%s1189 + $0x98] sm:$0xff] %v1228
                  %v1230 = vld [vmem:[%s1188 + $0xa0] sm:$0xff]
                  %1231 = vst [vmem:[%s1189 + $0xa0] sm:$0xff] %v1230
                  %v1232 = vld [vmem:[%s1188 + $0xa8] sm:$0xff]
                  %1233 = vst [vmem:[%s1189 + $0xa8] sm:$0xff] %v1232
                  %v1234 = vld [vmem:[%s1188 + $0xb0] sm:$0xff]
                  %1235 = vst [vmem:[%s1189 + $0xb0] sm:$0xff] %v1234
                  %v1236 = vld [vmem:[%s1188 + $0xb8] sm:$0xff]
                  %1237 = vst [vmem:[%s1189 + $0xb8] sm:$0xff] %v1236
                  %v1238 = vld [vmem:[%s1188 + $0xc0] sm:$0xff]
                  %1239 = vst [vmem:[%s1189 + $0xc0] sm:$0xff] %v1238
                  %v1240 = vld [vmem:[%s1188 + $0xc8] sm:$0xff]
                  %1241 = vst [vmem:[%s1189 + $0xc8] sm:$0xff] %v1240
                  %v1242 = vld [vmem:[%s1188 + $0xd0] sm:$0xff]
                  %1243 = vst [vmem:[%s1189 + $0xd0] sm:$0xff] %v1242
                  %v1244 = vld [vmem:[%s1188 + $0xd8] sm:$0xff]
                  %1245 = vst [vmem:[%s1189 + $0xd8] sm:$0xff] %v1244
                  %v1246 = vld [vmem:[%s1188 + $0xe0] sm:$0xff]
                  %1247 = vst [vmem:[%s1189 + $0xe0] sm:$0xff] %v1246
                  %v1248 = vld [vmem:[%s1188 + $0xe8] sm:$0xff]
                  %1249 = vst [vmem:[%s1189 + $0xe8] sm:$0xff] %v1248
                  %v1250 = vld [vmem:[%s1188 + $0xf0] sm:$0xff]
                  %1251 = vst [vmem:[%s1189 + $0xf0] sm:$0xff] %v1250
                  %v1252 = vld [vmem:[%s1188 + $0xf8] sm:$0xff]
                  %1253 = vst [vmem:[%s1189 + $0xf8] sm:$0xff] %v1252
                  %s1254 = sadd.s32 1, %s1187
                  %p1255 = scmp.ge.s32.totalorder %s1254, %s1180
                  %s1256 = scalar_select %p1255, 0, %s1254
                  %s1257 = smul.u32 %s1256, 256
                  %s1258 = smul.u32 %s1256, 256
                  %s1259 = scalar_lea.vmem %s1051, %s1257 [#allocation4]
                  %s1260 = scalar_lea.vmem %s1062, %s1258
                $region75: #{conv1d_softmax_etm_legacy.2} parent=69 // loop_footer
                  %s1184 = sadd.s32 %s1182, 1
                $region76: #{conv1d_softmax_etm_legacy.2} parent=69 // loop_footer_branch
                  %1181 = sbr.rel target = $region72
                $region77: #{conv1d_softmax_etm_legacy.2} parent=69 // loop_exit
                  _
                %s1261 = sshrl.u32 %s1058, 5
                %s1262 = sand.u32 %s1058, 31
                %s1263 = smul.u32 %s1261, 32
                %s1264 = smul.u32 8, %s1263
                %s1265 = scalar_lea.vmem %s1051, %s1264 [#allocation4]
                %s1266 = smul.u32 8, %s1263
                %s1267 = scalar_lea.vmem %s1062, %s1266
                // While loop
                $region78: #{conv1d_softmax_etm_legacy.2} parent=69 // loop_pre_header
                  _
                $region79: #{conv1d_softmax_etm_legacy.2} parent=69 // loop_header
                  %s1269 = sphi 0, %s1271
                  %p1270 = scmp.ge.s32.totalorder %s1269, %s1262
                  %s1274 = sphi 0, %s1281
                  %s1275 = sphi %s1265, %s1284
                  %s1276 = sphi %s1267, %s1285
                $region80: #{conv1d_softmax_etm_legacy.2} parent=69 // loop_header_branch
                  %1273 = sbr.rel (%p1270) target = $region84
                $region81: #{conv1d_softmax_etm_legacy.2} parent=69 // loop_body
                  %v1277 = vld [vmem:[%s1275] sm:$0xff]
                  %1278 = vst [vmem:[%s1276] sm:$0xff] %v1277
                  %s1279 = sadd.s32 1, %s1274
                  %p1280 = scmp.ge.s32.totalorder %s1279, %s1262
                  %s1281 = scalar_select %p1280, 0, %s1279
                  %s1282 = smul.u32 %s1281, 8
                  %s1283 = smul.u32 %s1281, 8
                  %s1284 = scalar_lea.vmem %s1265, %s1282 [#allocation4]
                  %s1285 = scalar_lea.vmem %s1267, %s1283
                $region82: #{conv1d_softmax_etm_legacy.2} parent=69 // loop_footer
                  %s1271 = sadd.s32 %s1269, 1
                $region83: #{conv1d_softmax_etm_legacy.2} parent=69 // loop_footer_branch
                  %1268 = sbr.rel target = $region79
                $region84: #{conv1d_softmax_etm_legacy.2} parent=69 // loop_exit
                  _
              $region70: #{conv1d_softmax_etm_legacy.2} parent=47 // pred_fallthru
                _
              // Predicated region
              $region85: #{conv1d_softmax_etm_legacy.2} parent=47 // pred_check
                _
              $region86: #{conv1d_softmax_etm_legacy.2} parent=47 // pred_check_branch
                %1287 = sbr.rel target = $region88
              $region87: #{conv1d_softmax_etm_legacy.2} parent=47 // pred_region
                _
              $region88: #{conv1d_softmax_etm_legacy.2} parent=47 // pred_fallthru
                _
            $region48: #{conv1d_softmax_etm_legacy.2} parent=43 // pred_fallthru
              _
            // Predicated region
            $region49: #{conv1d_softmax_etm_legacy.2} parent=43 // pred_check
              _
            $region50: #{conv1d_softmax_etm_legacy.2} parent=43 // pred_check_branch
              %1069 = sbr.rel target = $region52
            $region51: #{conv1d_softmax_etm_legacy.2} parent=43 // pred_region
              %s1071 = ssub.s32 256, 1
              %s1072 = sshrl.u32 %s1058, 5
              // While loop
              $region53: #{conv1d_softmax_etm_legacy.2} parent=51 // loop_pre_header
                _
              $region54: #{conv1d_softmax_etm_legacy.2} parent=51 // loop_header
                %s1074 = sphi 0, %s1076
                %p1075 = scmp.ge.s32.totalorder %s1074, %s1072
                %s1079 = sphi 0, %s1148
                %s1080 = sphi %s1051, %s1151
                %s1081 = sphi %s1062, %s1152
              $region55: #{conv1d_softmax_etm_legacy.2} parent=51 // loop_header_branch
                %1078 = sbr.rel (%p1075) target = $region59
              $region56: #{conv1d_softmax_etm_legacy.2} parent=51 // loop_body
                %v1082 = vld [vmem:[%s1080] sm:%s1071]
                %1083 = vst [vmem:[%s1081] sm:%s1071] %v1082
                %v1084 = vld [vmem:[%s1080 + $0x8] sm:%s1071]
                %1085 = vst [vmem:[%s1081 + $0x8] sm:%s1071] %v1084
                %v1086 = vld [vmem:[%s1080 + $0x10] sm:%s1071]
                %1087 = vst [vmem:[%s1081 + $0x10] sm:%s1071] %v1086
                %v1088 = vld [vmem:[%s1080 + $0x18] sm:%s1071]
                %1089 = vst [vmem:[%s1081 + $0x18] sm:%s1071] %v1088
                %v1090 = vld [vmem:[%s1080 + $0x20] sm:%s1071]
                %1091 = vst [vmem:[%s1081 + $0x20] sm:%s1071] %v1090
                %v1092 = vld [vmem:[%s1080 + $0x28] sm:%s1071]
                %1093 = vst [vmem:[%s1081 + $0x28] sm:%s1071] %v1092
                %v1094 = vld [vmem:[%s1080 + $0x30] sm:%s1071]
                %1095 = vst [vmem:[%s1081 + $0x30] sm:%s1071] %v1094
                %v1096 = vld [vmem:[%s1080 + $0x38] sm:%s1071]
                %1097 = vst [vmem:[%s1081 + $0x38] sm:%s1071] %v1096
                %v1098 = vld [vmem:[%s1080 + $0x40] sm:%s1071]
                %1099 = vst [vmem:[%s1081 + $0x40] sm:%s1071] %v1098
                %v1100 = vld [vmem:[%s1080 + $0x48] sm:%s1071]
                %1101 = vst [vmem:[%s1081 + $0x48] sm:%s1071] %v1100
                %v1102 = vld [vmem:[%s1080 + $0x50] sm:%s1071]
                %1103 = vst [vmem:[%s1081 + $0x50] sm:%s1071] %v1102
                %v1104 = vld [vmem:[%s1080 + $0x58] sm:%s1071]
                %1105 = vst [vmem:[%s1081 + $0x58] sm:%s1071] %v1104
                %v1106 = vld [vmem:[%s1080 + $0x60] sm:%s1071]
                %1107 = vst [vmem:[%s1081 + $0x60] sm:%s1071] %v1106
                %v1108 = vld [vmem:[%s1080 + $0x68] sm:%s1071]
                %1109 = vst [vmem:[%s1081 + $0x68] sm:%s1071] %v1108
                %v1110 = vld [vmem:[%s1080 + $0x70] sm:%s1071]
                %1111 = vst [vmem:[%s1081 + $0x70] sm:%s1071] %v1110
                %v1112 = vld [vmem:[%s1080 + $0x78] sm:%s1071]
                %1113 = vst [vmem:[%s1081 + $0x78] sm:%s1071] %v1112
                %v1114 = vld [vmem:[%s1080 + $0x80] sm:%s1071]
                %1115 = vst [vmem:[%s1081 + $0x80] sm:%s1071] %v1114
                %v1116 = vld [vmem:[%s1080 + $0x88] sm:%s1071]
                %1117 = vst [vmem:[%s1081 + $0x88] sm:%s1071] %v1116
                %v1118 = vld [vmem:[%s1080 + $0x90] sm:%s1071]
                %1119 = vst [vmem:[%s1081 + $0x90] sm:%s1071] %v1118
                %v1120 = vld [vmem:[%s1080 + $0x98] sm:%s1071]
                %1121 = vst [vmem:[%s1081 + $0x98] sm:%s1071] %v1120
                %v1122 = vld [vmem:[%s1080 + $0xa0] sm:%s1071]
                %1123 = vst [vmem:[%s1081 + $0xa0] sm:%s1071] %v1122
                %v1124 = vld [vmem:[%s1080 + $0xa8] sm:%s1071]
                %1125 = vst [vmem:[%s1081 + $0xa8] sm:%s1071] %v1124
                %v1126 = vld [vmem:[%s1080 + $0xb0] sm:%s1071]
                %1127 = vst [vmem:[%s1081 + $0xb0] sm:%s1071] %v1126
                %v1128 = vld [vmem:[%s1080 + $0xb8] sm:%s1071]
                %1129 = vst [vmem:[%s1081 + $0xb8] sm:%s1071] %v1128
                %v1130 = vld [vmem:[%s1080 + $0xc0] sm:%s1071]
                %1131 = vst [vmem:[%s1081 + $0xc0] sm:%s1071] %v1130
                %v1132 = vld [vmem:[%s1080 + $0xc8] sm:%s1071]
                %1133 = vst [vmem:[%s1081 + $0xc8] sm:%s1071] %v1132
                %v1134 = vld [vmem:[%s1080 + $0xd0] sm:%s1071]
                %1135 = vst [vmem:[%s1081 + $0xd0] sm:%s1071] %v1134
                %v1136 = vld [vmem:[%s1080 + $0xd8] sm:%s1071]
                %1137 = vst [vmem:[%s1081 + $0xd8] sm:%s1071] %v1136
                %v1138 = vld [vmem:[%s1080 + $0xe0] sm:%s1071]
                %1139 = vst [vmem:[%s1081 + $0xe0] sm:%s1071] %v1138
                %v1140 = vld [vmem:[%s1080 + $0xe8] sm:%s1071]
                %1141 = vst [vmem:[%s1081 + $0xe8] sm:%s1071] %v1140
                %v1142 = vld [vmem:[%s1080 + $0xf0] sm:%s1071]
                %1143 = vst [vmem:[%s1081 + $0xf0] sm:%s1071] %v1142
                %v1144 = vld [vmem:[%s1080 + $0xf8] sm:%s1071]
                %1145 = vst [vmem:[%s1081 + $0xf8] sm:%s1071] %v1144
                %s1146 = sadd.s32 1, %s1079
                %p1147 = scmp.ge.s32.totalorder %s1146, %s1072
                %s1148 = scalar_select %p1147, 0, %s1146
                %s1149 = smul.u32 %s1148, 256
                %s1150 = smul.u32 %s1148, 256
                %s1151 = scalar_lea.vmem %s1051, %s1149 [#allocation4]
                %s1152 = scalar_lea.vmem %s1062, %s1150
              $region57: #{conv1d_softmax_etm_legacy.2} parent=51 // loop_footer
                %s1076 = sadd.s32 %s1074, 1
              $region58: #{conv1d_softmax_etm_legacy.2} parent=51 // loop_footer_branch
                %1073 = sbr.rel target = $region54
              $region59: #{conv1d_softmax_etm_legacy.2} parent=51 // loop_exit
                _
              %s1153 = sshrl.u32 %s1058, 5
              %s1154 = sand.u32 %s1058, 31
              %s1155 = smul.u32 %s1153, 32
              %s1156 = smul.u32 8, %s1155
              %s1157 = scalar_lea.vmem %s1051, %s1156 [#allocation4]
              %s1158 = smul.u32 8, %s1155
              %s1159 = scalar_lea.vmem %s1062, %s1158
              // While loop
              $region60: #{conv1d_softmax_etm_legacy.2} parent=51 // loop_pre_header
                _
              $region61: #{conv1d_softmax_etm_legacy.2} parent=51 // loop_header
                %s1161 = sphi 0, %s1163
                %p1162 = scmp.ge.s32.totalorder %s1161, %s1154
                %s1166 = sphi 0, %s1173
                %s1167 = sphi %s1157, %s1176
                %s1168 = sphi %s1159, %s1177
              $region62: #{conv1d_softmax_etm_legacy.2} parent=51 // loop_header_branch
                %1165 = sbr.rel (%p1162) target = $region66
              $region63: #{conv1d_softmax_etm_legacy.2} parent=51 // loop_body
                %v1169 = vld [vmem:[%s1167] sm:%s1071]
                %1170 = vst [vmem:[%s1168] sm:%s1071] %v1169
                %s1171 = sadd.s32 1, %s1166
                %p1172 = scmp.ge.s32.totalorder %s1171, %s1154
                %s1173 = scalar_select %p1172, 0, %s1171
                %s1174 = smul.u32 %s1173, 8
                %s1175 = smul.u32 %s1173, 8
                %s1176 = scalar_lea.vmem %s1157, %s1174 [#allocation4]
                %s1177 = scalar_lea.vmem %s1159, %s1175
              $region64: #{conv1d_softmax_etm_legacy.2} parent=51 // loop_footer
                %s1163 = sadd.s32 %s1161, 1
              $region65: #{conv1d_softmax_etm_legacy.2} parent=51 // loop_footer_branch
                %1160 = sbr.rel target = $region61
              $region66: #{conv1d_softmax_etm_legacy.2} parent=51 // loop_exit
                _
            $region52: #{conv1d_softmax_etm_legacy.2} parent=43 // pred_fallthru
              _
          $region44: #{conv1d_softmax_etm_legacy.2} parent=39 // pred_fallthru
            _
          %1288 = vnop
        $region40: #{conv1d_softmax_etm_legacy.2} parent=27 // pred_fallthru
          _
        // Predicated region
        $region89: #{conv1d_softmax_etm_legacy.2} parent=27 // pred_check
          %p1289 = pneg %p101
        $region90: #{conv1d_softmax_etm_legacy.2} parent=27 // pred_check_branch
          %1291 = sbr.rel (%p1289) target = $region92
        $region91: #{conv1d_softmax_etm_legacy.2} parent=27 // pred_region
          _
        $region92: #{conv1d_softmax_etm_legacy.2} parent=27 // pred_fallthru
          _
        // Predicated region
        $region93: #{conv1d_softmax_etm_legacy.2} parent=27 // pred_check
          %p1292 = pneg %p101
        $region94: #{conv1d_softmax_etm_legacy.2} parent=27 // pred_check_branch
          %1294 = sbr.rel (%p1292) target = $region96
        $region95: #{conv1d_softmax_etm_legacy.2} parent=27 // pred_region
          _
        $region96: #{conv1d_softmax_etm_legacy.2} parent=27 // pred_fallthru
          _
      $region28: #{conv1d_softmax_etm_legacy.2} parent=5 // pred_fallthru
        _
      %p1295 = scmp.le.s32.totalorder 2, %s10
      // Predicated region
      $region97: #{conv1d_softmax_etm_legacy.2} parent=5 // pred_check
        %p1296 = pneg %p1295
      $region98: #{conv1d_softmax_etm_legacy.2} parent=5 // pred_check_branch
        %1298 = sbr.rel (%p1296) target = $region100
      $region99: #{conv1d_softmax_etm_legacy.2} parent=5 // pred_region
        %s1299 = ssub.s32 %s10, 2
        // Predicated region
        $region101: #{conv1d_softmax_etm_legacy.2} parent=99 // pred_check
          %p1300 = pneg %p86
        $region102: #{conv1d_softmax_etm_legacy.2} parent=99 // pred_check_branch
          %1302 = sbr.rel (%p1300) target = $region104
        $region103: #{conv1d_softmax_etm_legacy.2} parent=99 // pred_region
          %s1303 = sand.u32 %s71, 1
          %s1304 = sand.u32 %s71, 1
          %s1305 = smul.addr %s1304, 256
          %s1306 = scalar_lea.vmem [#allocation4], %s1305
        $region104: #{conv1d_softmax_etm_legacy.2} parent=99 // pred_fallthru
          _
      $region100: #{conv1d_softmax_etm_legacy.2} parent=5 // pred_fallthru
        _
    $region6: #{conv1d_softmax_etm_legacy.2} parent=1 // loop_footer
      %s14 = sadd.s32 1, %s10
    $region7: #{conv1d_softmax_etm_legacy.2} parent=1 // loop_footer_branch
      %9 = sbr.rel target = $region3
    $region8: #{conv1d_softmax_etm_legacy.2} parent=1 // loop_exit
      _

</llo_original>
